<compile_context>
chip_gen: v6e
topology: v6e:2x2x1
jax: 0.10.0
libtpu: 0.0.40
codegen_flags: <defaults>
</compile_context>

<pallas_src>
import functools

import jax
import jax.numpy as jnp
from jax import lax
from jax.experimental import pallas as pl
from jax.experimental.pallas import tpu as pltpu


_LANE = 128


def _round_up(x, m):
    return (x + m - 1) // m * m


def _device_kind():
    try:
        return jax.devices()[0].device_kind.lower()
    except Exception:
        return ""


def _tpu_vmem_bytes(kind):
    """Physical VMEM per TensorCore (best effort; conservative fallback)."""
    try:
        info = pltpu.get_tpu_info()
        vb = getattr(info, "vmem_capacity_bytes", None)
        if vb:
            return int(vb)
    except Exception:
        pass
    if "v5" in kind or "v6" in kind:
        return 128 * 1024 * 1024
    return 64 * 1024 * 1024          # conservative (v7x per-core VMEM)


def _pick_tile_h(H, W8, Wp, Cp, Op, budget_bytes, in_bytes, dw_bytes, min_tiles):
    """Largest tile height whose per-step VMEM footprint fits the budget."""
    def fits(th):
        in_blk = (th + 2) * Wp * Cp * in_bytes        # bf16 input tile (with halo)
        out_blk = th * W8 * Op * 4                    # f32 output tile
        xs_vals = 3 * (th + 2) * W8 * Cp * dw_bytes   # kx-shifted input views
        acc = th * W8 * Cp * 4                        # f32 depthwise accumulator
        y_bf16 = th * W8 * Cp * 2                     # matmul LHS (bf16)
        y2 = th * W8 * Op * 4                         # matmul result (f32)
        wts = 9 * Cp * dw_bytes + Cp * Op * 2 + 2 * Cp * 4 + 2 * Op * 4
        # inputs / outputs / weights are double-buffered by the pipeline.
        return 2 * (in_blk + out_blk + wts) + xs_vals + acc + y_bf16 + y2 <= budget_bytes

    th = 1
    for cand in range(H, 0, -1):
        if fits(cand):
            th = cand
            break
    if min_tiles > 1:                  # keep >= min_tiles grid steps along H
        th = min(th, max(1, -(-H // min_tiles)))
    return th


def _dwconv_kernel(x_ref, wdw_ref, b1_ref, a1_ref, wpw_ref, b2_ref, a2_ref, o_ref):
    """One (batch, H-tile) per grid step.

    x_ref  : (tH+2, Wp, Cp) or (1, tH+2, Wp, Cp)   bf16 input tile (halo rows incl.)
    wdw_ref: (9, Cp)   depthwise 3x3 weights, tap-major, BN1 scale pre-folded
    b1/a1  : (1, Cp)   folded BN1 bias (incl. dw bias) and PReLU1 slope, f32
    wpw_ref: (Cp, Op)  pointwise weights (BN2 scale pre-folded), bf16
    b2/a2  : (1, Op)   folded BN2 bias (incl. pw bias) and PReLU2 slope, f32
    o_ref  : (tH, W8, Op) f32 output tile
    """
    tH, W8, Op = o_ref.shape
    x = x_ref[0] if len(x_ref.shape) == 4 else x_ref[...]   # (tH+2, Wp, Cp)
    Cp = x.shape[-1]
    cdt = wdw_ref.dtype                                     # depthwise compute dtype

    # ---- depthwise 3x3 conv (stride 1), BN1 scale folded into the weights ----
    wdw = wdw_ref[...]                                      # (9, Cp), read once
    # Three kx-shifted views: only kx = 1, 2 are sublane-unaligned loads; every
    # other per-tap slice is along the tile-aligned leading H axis.
    xs = [x[:, kx:kx + W8, :].astype(cdt) for kx in range(3)]
    acc = jnp.zeros((tH, W8, Cp), jnp.float32)              # f32 accumulation
    for ky in range(3):
        for kx in range(3):
            acc = acc + xs[kx][ky:ky + tH] * wdw[3 * ky + kx]

    # ---- folded BN1 bias + PReLU1 (f32 on the VPU) ----
    y = acc + b1_ref[0]
    y = jnp.where(y > 0, y, a1_ref[0] * y)

    # ---- pointwise 1x1 conv: bf16 x bf16 -> f32 on the MXU ----
    # W8 is a multiple of 8, so these reshapes never cross (8,128) tiles.
    y2 = jnp.dot(y.reshape(tH * W8, Cp).astype(jnp.bfloat16), wpw_ref[...],
                 preferred_element_type=jnp.float32)        # (tH*W8, Op)

    # ---- folded BN2 bias + PReLU2 ----
    y2 = y2 + b2_ref[0]
    y2 = jnp.where(y2 > 0, y2, a2_ref[0] * y2)

    o_ref[...] = y2.reshape(tH, W8, Op).astype(o_ref.dtype)


def dwconv_pallas(x_nchw, params, *, stride=1, padding=1, use_element_halo=True):
    """Forward pass of DWConv. x_nchw: (N, C, H, W) float32, returns (N, Ouc, H, W)."""
    assert stride == 1 and padding == 1, "kernel written for 3x3, stride=1, padding=1"
    N, C, H, W = x_nchw.shape
    Ouc = params["w_pw"].shape[1]
    eps = 1e-5

    Cp = _round_up(C, _LANE)
    Op = _round_up(Ouc, _LANE)
    W8 = _round_up(W, 8)
    Wp = W8 + 2 * padding

    kind = _device_kind()
    dw_dtype = jnp.bfloat16 if any(t in kind for t in ("v6", "v7", "7x")) else jnp.float32
    multi_tc = any(t in kind for t in ("v7", "7x", "v4", "v5p"))

    phys_vmem = _tpu_vmem_bytes(kind)
    vmem_limit = min(phys_vmem * 3 // 4, 100 * 1024 * 1024)
    tile_budget = vmem_limit * 3 // 5

    # ---- fold BN (eval mode) + conv biases; fold BN scales into weights (f32) ----
    s1 = params["bn1_gamma"] / jnp.sqrt(params["bn1_var"] + eps)
    b1 = params["bn1_beta"] + s1 * (params["b_dw"] - params["bn1_mean"])
    s2 = params["bn2_gamma"] / jnp.sqrt(params["bn2_var"] + eps)
    b2 = params["bn2_beta"] + s2 * (params["b_pw"] - params["bn2_mean"])

    w_dw = jnp.pad(params["w_dw"].reshape(9, C) * s1[None, :],
                   ((0, 0), (0, Cp - C))).astype(dw_dtype)
    w_pw = jnp.pad(params["w_pw"] * s2[None, :],
                   ((0, Cp - C), (0, Op - Ouc))).astype(jnp.bfloat16)

    def pad_row(v, n):
        return jnp.pad(v, (0, n - v.shape[0])).astype(jnp.float32).reshape(1, n)

    b1p = pad_row(b1, Cp)
    a1p = pad_row(params["prelu1"], Cp)
    b2p = pad_row(b2, Op)
    a2p = pad_row(params["prelu2"], Op)

    # ---- tile height (generation-aware VMEM budget), pad H to a multiple ----
    tH = _pick_tile_h(H, W8, Wp, Cp, Op, tile_budget,
                      in_bytes=2, dw_bytes=jnp.dtype(dw_dtype).itemsize,
                      min_tiles=2 if (multi_tc and N == 1) else 1)
    Hp = _round_up(H, tH)
    nH = Hp // tH

    # ---- NCHW -> NHWC, spatial + channel zero-pad, bf16 in HBM ----
    x = jnp.transpose(x_nchw, (0, 2, 3, 1))
    xp = jnp.pad(x, ((0, 0),
                     (padding, padding + (Hp - H)),
                     (padding, padding + (W8 - W)),
                     (0, Cp - C))).astype(jnp.bfloat16)      # (N, Hp+2, Wp, Cp)

    weight_specs = [
        pl.BlockSpec((9, Cp), lambda n, h: (0, 0)),
        pl.BlockSpec((1, Cp), lambda n, h: (0, 0)),
        pl.BlockSpec((1, Cp), lambda n, h: (0, 0)),
        pl.BlockSpec((Cp, Op), lambda n, h: (0, 0)),
        pl.BlockSpec((1, Op), lambda n, h: (0, 0)),
        pl.BlockSpec((1, Op), lambda n, h: (0, 0)),
    ]
    out_spec = pl.BlockSpec((None, tH, W8, Op), lambda n, h: (n, h, 0, 0))

    if use_element_halo:
        # Overlapping (tH+2)-row window straight from the padded array: the H
        # dimension uses element-offset indexing (offset = h * tH).
        x_in = xp
        x_spec = pl.BlockSpec((1, pl.Element(tH + 2), Wp, Cp),
                              lambda n, h: (n, h * tH, 0, 0))
    else:
        # Fallback: materialize overlapping halo tiles in the wrapper.
        x_in = jnp.stack([xp[:, h * tH:h * tH + tH + 2] for h in range(nH)],
                         axis=1)                              # (N, nH, tH+2, Wp, Cp)
        x_spec = pl.BlockSpec((None, None, tH + 2, Wp, Cp),
                              lambda n, h: (n, h, 0, 0, 0))

    out_padded = pl.pallas_call(
        _dwconv_kernel,
        out_shape=jax.ShapeDtypeStruct((N, Hp, W8, Op), jnp.float32),
        grid_spec=pltpu.PrefetchScalarGridSpec(
            num_scalar_prefetch=0,
            grid=(N, nH),
            in_specs=[x_spec] + weight_specs,
            out_specs=out_spec),
        compiler_params=pltpu.CompilerParams(
            dimension_semantics=("parallel", "parallel"),
            vmem_limit_bytes=int(vmem_limit)),
    )(x_in, w_dw, b1p, a1p, w_pw, b2p, a2p)

    # strip spatial/channel padding, NHWC -> NCHW to match the PyTorch convention.
    return jnp.transpose(out_padded[:, :H, :W, :Ouc], (0, 3, 1, 2))


def dwconv_reference(x_nchw, params, *, stride=1, padding=1):
    """Pure-JAX f32 reference using lax.conv_general_dilated (eval-mode BN)."""
    eps = 1e-5
    C = x_nchw.shape[1]
    w_dw_oihw = jnp.transpose(params["w_dw"], (2, 0, 1))[:, None, :, :]
    y = lax.conv_general_dilated(
        x_nchw, w_dw_oihw, window_strides=(stride, stride),
        padding=((padding, padding), (padding, padding)),
        dimension_numbers=("NCHW", "OIHW", "NCHW"),
        feature_group_count=C)
    y = y + params["b_dw"][None, :, None, None]
    s1 = params["bn1_gamma"] / jnp.sqrt(params["bn1_var"] + eps)
    y = (y - params["bn1_mean"][None, :, None, None]) * s1[None, :, None, None] \
        + params["bn1_beta"][None, :, None, None]
    a1 = params["prelu1"][None, :, None, None]
    y = jnp.where(y > 0, y, a1 * y)

    w_pw_oihw = jnp.transpose(params["w_pw"], (1, 0))[:, :, None, None]
    z = lax.conv_general_dilated(
        y, w_pw_oihw, window_strides=(1, 1), padding=((0, 0), (0, 0)),
        dimension_numbers=("NCHW", "OIHW", "NCHW"))
    z = z + params["b_pw"][None, :, None, None]
    s2 = params["bn2_gamma"] / jnp.sqrt(params["bn2_var"] + eps)
    z = (z - params["bn2_mean"][None, :, None, None]) * s2[None, :, None, None] \
        + params["bn2_beta"][None, :, None, None]
    a2 = params["prelu2"][None, :, None, None]
    return jnp.where(z > 0, z, a2 * z)


def init_params(key, inc, ouc):
    ks = jax.random.split(key, 8)
    return {
        "w_dw": 0.1 * jax.random.normal(ks[0], (3, 3, inc), jnp.float32),
        "b_dw": 0.1 * jax.random.normal(ks[1], (inc,), jnp.float32),
        "bn1_gamma": 1.0 + 0.1 * jax.random.normal(ks[2], (inc,), jnp.float32),
        "bn1_beta": 0.1 * jax.random.normal(ks[3], (inc,), jnp.float32),
        "bn1_mean": jnp.zeros((inc,), jnp.float32),
        "bn1_var": jnp.ones((inc,), jnp.float32),
        "prelu1": jnp.full((inc,), 0.25, jnp.float32),
        "w_pw": 0.1 * jax.random.normal(ks[4], (inc, ouc), jnp.float32),
        "b_pw": 0.1 * jax.random.normal(ks[5], (ouc,), jnp.float32),
        "bn2_gamma": 1.0 + 0.1 * jax.random.normal(ks[6], (ouc,), jnp.float32),
        "bn2_beta": 0.1 * jax.random.normal(ks[7], (ouc,), jnp.float32),
        "bn2_mean": jnp.zeros((ouc,), jnp.float32),
        "bn2_var": jnp.ones((ouc,), jnp.float32),
        "prelu2": jnp.full((ouc,), 0.25, jnp.float32),
    }


if __name__ == "__main__":
    key = jax.random.PRNGKey(0)
    k_x, k_p = jax.random.split(key)

    N, inc, ouc, H, W = 2, 4, 8, 16, 16
    x = jax.random.normal(k_x, (N, inc, H, W), jnp.float32)
    params = init_params(k_p, inc, ouc)

    ref = jax.block_until_ready(dwconv_reference(x, params, stride=1, padding=1))

    def run(use_element_halo):
        fwd = jax.jit(functools.partial(dwconv_pallas, stride=1, padding=1,
                                        use_element_halo=use_element_halo))
        return jax.block_until_ready(fwd(x, params))

    # Primary path: pl.Element halo windows (no wrapper-side halo stack).
    # If it fails to lower/run or misses accuracy on this backend, fall back to
    # the previously validated halo-tile path.
    out = None
    try:
        cand = run(True)
        if cand.shape == ref.shape and bool(
                jnp.allclose(cand, ref, atol=2e-2, rtol=2e-2)):
            out = cand
    except Exception:
        out = None
    if out is None:
        out = run(False)

    assert out.shape == (N, ouc, H, W)
    # Tolerance loosened vs. the f32 reference: bf16 input, bf16 depthwise
    # multiplies (f32 accumulation) and a bf16 MXU pointwise matmul.
    err = jnp.max(jnp.abs(out - ref))
    assert jnp.allclose(out, ref, atol=2e-2, rtol=2e-2), f"max abs err = {err}"

    print("KERNEL_OK")
</pallas_src>

<mosaic_0001>
module attributes {stable_mosaic.version = 11 : i64} {
  func.func @_dwconv_kernel(%arg0: i32, %arg1: i32, %arg2: memref<1x1x18x18x128xbf16, #tpu.memory_space<vmem>>, %arg3: memref<9x128xf32, #tpu.memory_space<vmem>>, %arg4: memref<1x128xf32, #tpu.memory_space<vmem>>, %arg5: memref<1x128xf32, #tpu.memory_space<vmem>>, %arg6: memref<128x128xbf16, #tpu.memory_space<vmem>>, %arg7: memref<1x128xf32, #tpu.memory_space<vmem>>, %arg8: memref<1x128xf32, #tpu.memory_space<vmem>>, %arg9: memref<1x16x16x128xf32, #tpu.memory_space<vmem>>) attributes {dimension_semantics = [#tpu.dimension_semantics<parallel>, #tpu.dimension_semantics<parallel>], iteration_bounds = array<i64: 2, 1>, scalar_prefetch = 0 : i64, scratch_operands = 0 : i64, tpu.core_type = #tpu.core_type<tc>, window_params = [{transform_indices = @transform_0, window_bounds = array<i64: 1, 1, 18, 18, 128>}, {pipeline_mode = #tpu.pipeline_mode<synchronous>, transform_indices = @transform_1, window_bounds = array<i64: 9, 128>}, {pipeline_mode = #tpu.pipeline_mode<synchronous>, transform_indices = @transform_2, window_bounds = array<i64: 1, 128>}, {pipeline_mode = #tpu.pipeline_mode<synchronous>, transform_indices = @transform_3, window_bounds = array<i64: 1, 128>}, {pipeline_mode = #tpu.pipeline_mode<synchronous>, transform_indices = @transform_4, window_bounds = array<i64: 128, 128>}, {pipeline_mode = #tpu.pipeline_mode<synchronous>, transform_indices = @transform_5, window_bounds = array<i64: 1, 128>}, {pipeline_mode = #tpu.pipeline_mode<synchronous>, transform_indices = @transform_6, window_bounds = array<i64: 1, 128>}, {transform_indices = @transform_7, window_bounds = array<i64: 1, 16, 16, 128>}]} {
    %c0 = arith.constant 0 : index
    %c0_0 = arith.constant 0 : index
    %c0_1 = arith.constant 0 : index
    %c0_2 = arith.constant 0 : index
    %c0_3 = arith.constant 0 : index
    %0 = vector.load %arg2[%c0, %c0_0, %c0_1, %c0_2, %c0_3] : memref<1x1x18x18x128xbf16, #tpu.memory_space<vmem>>, vector<1x1x18x18x128xbf16>
    %1 = vector.shape_cast %0 : vector<1x1x18x18x128xbf16> to vector<18x18x128xbf16>
    %c0_4 = arith.constant 0 : index
    %c0_5 = arith.constant 0 : index
    %2 = vector.load %arg3[%c0_4, %c0_5] : memref<9x128xf32, #tpu.memory_space<vmem>>, vector<9x128xf32>
    %3 = vector.extract_strided_slice %1 {offsets = [0, 0, 0], sizes = [18, 16, 128], strides = [1, 1, 1]} : vector<18x18x128xbf16> to vector<18x16x128xbf16>
    %4 = arith.extf %3 : vector<18x16x128xbf16> to vector<18x16x128xf32>
    %5 = vector.extract_strided_slice %1 {offsets = [0, 1, 0], sizes = [18, 16, 128], strides = [1, 1, 1]} : vector<18x18x128xbf16> to vector<18x16x128xbf16>
    %6 = arith.extf %5 : vector<18x16x128xbf16> to vector<18x16x128xf32>
    %7 = vector.extract_strided_slice %1 {offsets = [0, 2, 0], sizes = [18, 16, 128], strides = [1, 1, 1]} : vector<18x18x128xbf16> to vector<18x16x128xbf16>
    %8 = arith.extf %7 : vector<18x16x128xbf16> to vector<18x16x128xf32>
    %cst = arith.constant 0.000000e+00 : f32
    %9 = vector.broadcast %cst : f32 to vector<16x16x128xf32>
    %10 = vector.extract_strided_slice %4 {offsets = [0, 0, 0], sizes = [16, 16, 128], strides = [1, 1, 1]} : vector<18x16x128xf32> to vector<16x16x128xf32>
    %11 = vector.extract_strided_slice %2 {offsets = [0, 0], sizes = [1, 128], strides = [1, 1]} : vector<9x128xf32> to vector<1x128xf32>
    %12 = vector.shape_cast %11 : vector<1x128xf32> to vector<128xf32>
    %13 = vector.shape_cast %12 : vector<128xf32> to vector<1x1x128xf32>
    %14 = vector.broadcast %13 : vector<1x1x128xf32> to vector<16x16x128xf32>
    %15 = arith.mulf %10, %14 : vector<16x16x128xf32>
    %16 = arith.addf %9, %15 : vector<16x16x128xf32>
    %17 = vector.extract_strided_slice %6 {offsets = [0, 0, 0], sizes = [16, 16, 128], strides = [1, 1, 1]} : vector<18x16x128xf32> to vector<16x16x128xf32>
    %18 = vector.extract_strided_slice %2 {offsets = [1, 0], sizes = [1, 128], strides = [1, 1]} : vector<9x128xf32> to vector<1x128xf32>
    %19 = vector.shape_cast %18 : vector<1x128xf32> to vector<128xf32>
    %20 = vector.shape_cast %19 : vector<128xf32> to vector<1x1x128xf32>
    %21 = vector.broadcast %20 : vector<1x1x128xf32> to vector<16x16x128xf32>
    %22 = arith.mulf %17, %21 : vector<16x16x128xf32>
    %23 = arith.addf %16, %22 : vector<16x16x128xf32>
    %24 = vector.extract_strided_slice %8 {offsets = [0, 0, 0], sizes = [16, 16, 128], strides = [1, 1, 1]} : vector<18x16x128xf32> to vector<16x16x128xf32>
    %25 = vector.extract_strided_slice %2 {offsets = [2, 0], sizes = [1, 128], strides = [1, 1]} : vector<9x128xf32> to vector<1x128xf32>
    %26 = vector.shape_cast %25 : vector<1x128xf32> to vector<128xf32>
    %27 = vector.shape_cast %26 : vector<128xf32> to vector<1x1x128xf32>
    %28 = vector.broadcast %27 : vector<1x1x128xf32> to vector<16x16x128xf32>
    %29 = arith.mulf %24, %28 : vector<16x16x128xf32>
    %30 = arith.addf %23, %29 : vector<16x16x128xf32>
    %31 = vector.extract_strided_slice %4 {offsets = [1, 0, 0], sizes = [16, 16, 128], strides = [1, 1, 1]} : vector<18x16x128xf32> to vector<16x16x128xf32>
    %32 = vector.extract_strided_slice %2 {offsets = [3, 0], sizes = [1, 128], strides = [1, 1]} : vector<9x128xf32> to vector<1x128xf32>
    %33 = vector.shape_cast %32 : vector<1x128xf32> to vector<128xf32>
    %34 = vector.shape_cast %33 : vector<128xf32> to vector<1x1x128xf32>
    %35 = vector.broadcast %34 : vector<1x1x128xf32> to vector<16x16x128xf32>
    %36 = arith.mulf %31, %35 : vector<16x16x128xf32>
    %37 = arith.addf %30, %36 : vector<16x16x128xf32>
    %38 = vector.extract_strided_slice %6 {offsets = [1, 0, 0], sizes = [16, 16, 128], strides = [1, 1, 1]} : vector<18x16x128xf32> to vector<16x16x128xf32>
    %39 = vector.extract_strided_slice %2 {offsets = [4, 0], sizes = [1, 128], strides = [1, 1]} : vector<9x128xf32> to vector<1x128xf32>
    %40 = vector.shape_cast %39 : vector<1x128xf32> to vector<128xf32>
    %41 = vector.shape_cast %40 : vector<128xf32> to vector<1x1x128xf32>
    %42 = vector.broadcast %41 : vector<1x1x128xf32> to vector<16x16x128xf32>
    %43 = arith.mulf %38, %42 : vector<16x16x128xf32>
    %44 = arith.addf %37, %43 : vector<16x16x128xf32>
    %45 = vector.extract_strided_slice %8 {offsets = [1, 0, 0], sizes = [16, 16, 128], strides = [1, 1, 1]} : vector<18x16x128xf32> to vector<16x16x128xf32>
    %46 = vector.extract_strided_slice %2 {offsets = [5, 0], sizes = [1, 128], strides = [1, 1]} : vector<9x128xf32> to vector<1x128xf32>
    %47 = vector.shape_cast %46 : vector<1x128xf32> to vector<128xf32>
    %48 = vector.shape_cast %47 : vector<128xf32> to vector<1x1x128xf32>
    %49 = vector.broadcast %48 : vector<1x1x128xf32> to vector<16x16x128xf32>
    %50 = arith.mulf %45, %49 : vector<16x16x128xf32>
    %51 = arith.addf %44, %50 : vector<16x16x128xf32>
    %52 = vector.extract_strided_slice %4 {offsets = [2, 0, 0], sizes = [16, 16, 128], strides = [1, 1, 1]} : vector<18x16x128xf32> to vector<16x16x128xf32>
    %53 = vector.extract_strided_slice %2 {offsets = [6, 0], sizes = [1, 128], strides = [1, 1]} : vector<9x128xf32> to vector<1x128xf32>
    %54 = vector.shape_cast %53 : vector<1x128xf32> to vector<128xf32>
    %55 = vector.shape_cast %54 : vector<128xf32> to vector<1x1x128xf32>
    %56 = vector.broadcast %55 : vector<1x1x128xf32> to vector<16x16x128xf32>
    %57 = arith.mulf %52, %56 : vector<16x16x128xf32>
    %58 = arith.addf %51, %57 : vector<16x16x128xf32>
    %59 = vector.extract_strided_slice %6 {offsets = [2, 0, 0], sizes = [16, 16, 128], strides = [1, 1, 1]} : vector<18x16x128xf32> to vector<16x16x128xf32>
    %60 = vector.extract_strided_slice %2 {offsets = [7, 0], sizes = [1, 128], strides = [1, 1]} : vector<9x128xf32> to vector<1x128xf32>
    %61 = vector.shape_cast %60 : vector<1x128xf32> to vector<128xf32>
    %62 = vector.shape_cast %61 : vector<128xf32> to vector<1x1x128xf32>
    %63 = vector.broadcast %62 : vector<1x1x128xf32> to vector<16x16x128xf32>
    %64 = arith.mulf %59, %63 : vector<16x16x128xf32>
    %65 = arith.addf %58, %64 : vector<16x16x128xf32>
    %66 = vector.extract_strided_slice %8 {offsets = [2, 0, 0], sizes = [16, 16, 128], strides = [1, 1, 1]} : vector<18x16x128xf32> to vector<16x16x128xf32>
    %67 = vector.extract_strided_slice %2 {offsets = [8, 0], sizes = [1, 128], strides = [1, 1]} : vector<9x128xf32> to vector<1x128xf32>
    %68 = vector.shape_cast %67 : vector<1x128xf32> to vector<128xf32>
    %69 = vector.shape_cast %68 : vector<128xf32> to vector<1x1x128xf32>
    %70 = vector.broadcast %69 : vector<1x1x128xf32> to vector<16x16x128xf32>
    %71 = arith.mulf %66, %70 : vector<16x16x128xf32>
    %72 = arith.addf %65, %71 : vector<16x16x128xf32>
    %c0_6 = arith.constant 0 : index
    %c0_7 = arith.constant 0 : index
    %73 = vector.load %arg4[%c0_6, %c0_7] : memref<1x128xf32, #tpu.memory_space<vmem>>, vector<1x128xf32>
    %74 = vector.shape_cast %73 : vector<1x128xf32> to vector<128xf32>
    %75 = vector.shape_cast %74 : vector<128xf32> to vector<1x1x128xf32>
    %76 = vector.broadcast %75 : vector<1x1x128xf32> to vector<16x16x128xf32>
    %77 = arith.addf %72, %76 : vector<16x16x128xf32>
    %cst_8 = arith.constant 0.000000e+00 : f32
    %78 = vector.broadcast %cst_8 : f32 to vector<16x16x128xf32>
    %79 = arith.cmpf ogt, %77, %78 : vector<16x16x128xf32>
    %c0_9 = arith.constant 0 : index
    %c0_10 = arith.constant 0 : index
    %80 = vector.load %arg5[%c0_9, %c0_10] : memref<1x128xf32, #tpu.memory_space<vmem>>, vector<1x128xf32>
    %81 = vector.shape_cast %80 : vector<1x128xf32> to vector<128xf32>
    %82 = vector.shape_cast %81 : vector<128xf32> to vector<1x1x128xf32>
    %83 = vector.broadcast %82 : vector<1x1x128xf32> to vector<16x16x128xf32>
    %84 = arith.mulf %83, %77 : vector<16x16x128xf32>
    %85 = arith.select %79, %77, %84 : vector<16x16x128xi1>, vector<16x16x128xf32>
    %86 = vector.shape_cast %85 : vector<16x16x128xf32> to vector<256x128xf32>
    %87 = arith.truncf %86 : vector<256x128xf32> to vector<256x128xbf16>
    %c0_11 = arith.constant 0 : index
    %c0_12 = arith.constant 0 : index
    %88 = vector.load %arg6[%c0_11, %c0_12] : memref<128x128xbf16, #tpu.memory_space<vmem>>, vector<128x128xbf16>
    %cst_13 = arith.constant dense<0.000000e+00> : vector<256x128xf32>
    %89 = tpu.matmul %87, %88, %cst_13 {dimension_numbers = #tpu.dot_dimension_numbers<[1], [0], [0], [1], [0, 0, 1, 1], [], []>} : vector<256x128xbf16>, vector<128x128xbf16>, vector<256x128xf32> -> vector<256x128xf32>
    %c0_14 = arith.constant 0 : index
    %c0_15 = arith.constant 0 : index
    %90 = vector.load %arg7[%c0_14, %c0_15] : memref<1x128xf32, #tpu.memory_space<vmem>>, vector<1x128xf32>
    %91 = vector.shape_cast %90 : vector<1x128xf32> to vector<128xf32>
    %92 = vector.shape_cast %91 : vector<128xf32> to vector<1x128xf32>
    %93 = vector.broadcast %92 : vector<1x128xf32> to vector<256x128xf32>
    %94 = arith.addf %89, %93 : vector<256x128xf32>
    %cst_16 = arith.constant 0.000000e+00 : f32
    %95 = vector.broadcast %cst_16 : f32 to vector<256x128xf32>
    %96 = arith.cmpf ogt, %94, %95 : vector<256x128xf32>
    %c0_17 = arith.constant 0 : index
    %c0_18 = arith.constant 0 : index
    %97 = vector.load %arg8[%c0_17, %c0_18] : memref<1x128xf32, #tpu.memory_space<vmem>>, vector<1x128xf32>
    %98 = vector.shape_cast %97 : vector<1x128xf32> to vector<128xf32>
    %99 = vector.shape_cast %98 : vector<128xf32> to vector<1x128xf32>
    %100 = vector.broadcast %99 : vector<1x128xf32> to vector<256x128xf32>
    %101 = arith.mulf %100, %94 : vector<256x128xf32>
    %102 = arith.select %96, %94, %101 : vector<256x128xi1>, vector<256x128xf32>
    %103 = vector.shape_cast %102 : vector<256x128xf32> to vector<16x16x128xf32>
    %c0_19 = arith.constant 0 : index
    %c0_20 = arith.constant 0 : index
    %c0_21 = arith.constant 0 : index
    %c0_22 = arith.constant 0 : index
    %104 = vector.load %arg9[%c0_19, %c0_20, %c0_21, %c0_22] : memref<1x16x16x128xf32, #tpu.memory_space<vmem>>, vector<1x16x16x128xf32>
    %105 = vector.shape_cast %104 : vector<1x16x16x128xf32> to vector<16x16x128xf32>
    %106 = vector.shape_cast %103 : vector<16x16x128xf32> to vector<1x16x16x128xf32>
    tpu.vector_store %arg9[%c0_19, %c0_20, %c0_21, %c0_22], %106 {strides = array<i32>} : memref<1x16x16x128xf32, #tpu.memory_space<vmem>>, vector<1x16x16x128xf32>,
    return
  }
  func.func @transform_0(%arg0: i32, %arg1: i32) -> (i32, i32, i32, i32, i32) {
    %c0_i32 = arith.constant 0 : i32
    %c0_i32_0 = arith.constant 0 : i32
    %c0_i32_1 = arith.constant 0 : i32
    %c0_i32_2 = arith.constant 0 : i32
    return %arg0, %arg1, %c0_i32, %c0_i32_0, %c0_i32_1 : i32, i32, i32, i32, i32
  }
  func.func @transform_1(%arg0: i32, %arg1: i32) -> (i32, i32) {
    %c0_i32 = arith.constant 0 : i32
    %c0_i32_0 = arith.constant 0 : i32
    %c0_i32_1 = arith.constant 0 : i32
    return %c0_i32, %c0_i32_0 : i32, i32
  }
  func.func @transform_2(%arg0: i32, %arg1: i32) -> (i32, i32) {
    %c0_i32 = arith.constant 0 : i32
    %c0_i32_0 = arith.constant 0 : i32
    %c0_i32_1 = arith.constant 0 : i32
    return %c0_i32, %c0_i32_0 : i32, i32
  }
  func.func @transform_3(%arg0: i32, %arg1: i32) -> (i32, i32) {
    %c0_i32 = arith.constant 0 : i32
    %c0_i32_0 = arith.constant 0 : i32
    %c0_i32_1 = arith.constant 0 : i32
    return %c0_i32, %c0_i32_0 : i32, i32
  }
  func.func @transform_4(%arg0: i32, %arg1: i32) -> (i32, i32) {
    %c0_i32 = arith.constant 0 : i32
    %c0_i32_0 = arith.constant 0 : i32
    %c0_i32_1 = arith.constant 0 : i32
    return %c0_i32, %c0_i32_0 : i32, i32
  }
  func.func @transform_5(%arg0: i32, %arg1: i32) -> (i32, i32) {
    %c0_i32 = arith.constant 0 : i32
    %c0_i32_0 = arith.constant 0 : i32
    %c0_i32_1 = arith.constant 0 : i32
    return %c0_i32, %c0_i32_0 : i32, i32
  }
  func.func @transform_6(%arg0: i32, %arg1: i32) -> (i32, i32) {
    %c0_i32 = arith.constant 0 : i32
    %c0_i32_0 = arith.constant 0 : i32
    %c0_i32_1 = arith.constant 0 : i32
    return %c0_i32, %c0_i32_0 : i32, i32
  }
  func.func @transform_7(%arg0: i32, %arg1: i32) -> (i32, i32, i32, i32) {
    %c0_i32 = arith.constant 0 : i32
    %c0_i32_0 = arith.constant 0 : i32
    %c0_i32_1 = arith.constant 0 : i32
    return %arg0, %arg1, %c0_i32, %c0_i32_0 : i32, i32, i32, i32
  }
}

</mosaic_0001>

<llo_original>
// kernel: dwconv_pallas.1
$region0: #{dwconv_pallas.1}
  #allocation0 [shape = 'u32[]', space=smem, size = 0x4, offset = 0x4, fixed_abs, tag = 'smem constant byte address 0x4 - core index']
  #allocation1 [shape = 'u32[144,128]{1,0:T(1,128)}', space=vmem, size = 0x12000, scoped, tag = 'internal scratch']
  %s0 = inlined_call_operand.vmem [shape: bf16[2,1,18,18,128], index: 0, kind: input, shape index: {}]
  %s1 = inlined_call_operand.vmem [shape: f32[9,128], index: 1, kind: input, shape index: {}]
  %s2 = inlined_call_operand.vmem [shape: f32[1,128], index: 2, kind: input, shape index: {}]
  %s3 = inlined_call_operand.vmem [shape: f32[1,128], index: 3, kind: input, shape index: {}]
  %s4 = inlined_call_operand.vmem [shape: bf16[128,128], index: 4, kind: input, shape index: {}]
  %s5 = inlined_call_operand.vmem [shape: f32[1,128], index: 5, kind: input, shape index: {}]
  %s6 = inlined_call_operand.vmem [shape: f32[1,128], index: 6, kind: input, shape index: {}]
  %s7 = inlined_call_operand.vmem [shape: f32[2,16,16,128], index: 7, kind: output, shape index: {}]
  %s8 = sld [smem:[#allocation0]]
  $region61: #{dwconv_pallas.1} parent=0
    _
  %s10 = ssub.s32 1, %s8
  %s11 = scalar_select 0, %s10, %s8
  loop: start=0, step=1, limit=4
  $region2: #{dwconv_pallas.1} parent=0 // loop_pre_header
    _
  $region3: #{dwconv_pallas.1} parent=0 // loop_header
    %s13 = sphi 0, %s17
    %p14 = scmp.ge.s32.totalorder %s13, 4
    %s20 = sphi 0, %s32
    %s21 = sphi 0, %s28
    %s22 = sphi 0, %s20
    %s23 = sphi 0, %s21
    %s24 = sphi 0, %s22
    %s25 = sphi 0, %s23
    %s37 = sphi 0, %s39
    %s40 = sphi 0, %s37
    %s41 = sphi 0, %s40
    %s57 = sphi 0, %s41
    %s61 = sphi 0, %s61
    %s63 = sphi 0, %s61
    %s64 = sphi 0, %s63
    %s78 = sphi 0, %s64
    %s82 = sphi 0, %s82
    %s84 = sphi 0, %s82
    %s85 = sphi 0, %s84
    %s99 = sphi 0, %s85
    %s103 = sphi 0, %s103
    %s105 = sphi 0, %s103
    %s106 = sphi 0, %s105
    %s120 = sphi 0, %s106
    %s124 = sphi 0, %s124
    %s126 = sphi 0, %s124
    %s127 = sphi 0, %s126
    %s141 = sphi 0, %s127
    %s145 = sphi 0, %s145
    %s147 = sphi 0, %s145
    %s148 = sphi 0, %s147
    %s162 = sphi 0, %s148
    %s166 = sphi 0, %s166
    %s168 = sphi 0, %s166
    %s169 = sphi 0, %s168
    %s183 = sphi 0, %s169
    %s191 = sphi 0, %s193
    %s194 = sphi 0, %s191
    %s195 = sphi 0, %s194
    %s211 = sphi 0, %s195
  $region4: #{dwconv_pallas.1} parent=0 // loop_header_branch
    %16 = sbr.rel (%p14) target = $region8
  $region5: #{dwconv_pallas.1} parent=0 // loop_body
    %s18 = ssub.s32 %s13, 1
    %s19 = ssub.s32 %s13, 2
    %s26 = sadd.s32 1, %s21
    %p27 = scmp.ge.s32.totalorder %s26, 1
    %s28 = scalar_select %p27, 0, %s26
    %s29 = sadd.s32 1, %s20
    %s30 = scalar_select %p27, %s29, %s20
    %p31 = scmp.ge.s32.totalorder %s30, 2
    %s32 = scalar_select %p31, 0, %s30
    %s33 = ssub.s32 %s20, %s32
    %s34 = ssub.s32 %s21, %s28
    %s35 = sor.u32 %s33, %s34
    %p36 = scmp.eq.s32.totalorder %s35, 0
    %s38 = sadd.s32 %s37, 1
    %s39 = scalar_select %p36, %s37, %s38
    %p42 = pneg %p36
    %p43 = scmp.eq.s32.totalorder %s13, 1
    %p44 = por %p42, %p43
    %p45 = scmp.ne.s32.totalorder %s37, %s40
    %p46 = scmp.eq.s32.totalorder %s13, 0
    %p47 = por %p45, %p46
    %p48 = scmp.ne.s32.totalorder %s37, %s40
    %p49 = scmp.eq.s32.totalorder %s18, 1
    %p50 = por %p48, %p49
    %p51 = scmp.ne.s32.totalorder %s40, %s41
    %p52 = scmp.eq.s32.totalorder %s18, 0
    %p53 = por %p51, %p52
    %p54 = scmp.ne.s32.totalorder %s40, %s41
    %p55 = scmp.eq.s32.totalorder %s19, 1
    %p56 = por %p54, %p55
    %p58 = scmp.ne.s32.totalorder %s41, %s57
    %p59 = scmp.eq.s32.totalorder %s19, 0
    %p60 = por %p58, %p59
    %s62 = sadd.s32 %s61, 1
    %p65 = scmp.eq.s32.totalorder %s13, 1
    %p66 = scmp.ne.s32.totalorder %s61, %s63
    %p67 = scmp.eq.s32.totalorder %s13, 0
    %p68 = por %p66, %p67
    %p69 = scmp.ne.s32.totalorder %s61, %s63
    %p70 = scmp.eq.s32.totalorder %s18, 1
    %p71 = por %p69, %p70
    %p72 = scmp.ne.s32.totalorder %s63, %s64
    %p73 = scmp.eq.s32.totalorder %s18, 0
    %p74 = por %p72, %p73
    %p75 = scmp.ne.s32.totalorder %s63, %s64
    %p76 = scmp.eq.s32.totalorder %s19, 1
    %p77 = por %p75, %p76
    %p79 = scmp.ne.s32.totalorder %s64, %s78
    %p80 = scmp.eq.s32.totalorder %s19, 0
    %p81 = por %p79, %p80
    %s83 = sadd.s32 %s82, 1
    %p86 = scmp.eq.s32.totalorder %s13, 1
    %p87 = scmp.ne.s32.totalorder %s82, %s84
    %p88 = scmp.eq.s32.totalorder %s13, 0
    %p89 = por %p87, %p88
    %p90 = scmp.ne.s32.totalorder %s82, %s84
    %p91 = scmp.eq.s32.totalorder %s18, 1
    %p92 = por %p90, %p91
    %p93 = scmp.ne.s32.totalorder %s84, %s85
    %p94 = scmp.eq.s32.totalorder %s18, 0
    %p95 = por %p93, %p94
    %p96 = scmp.ne.s32.totalorder %s84, %s85
    %p97 = scmp.eq.s32.totalorder %s19, 1
    %p98 = por %p96, %p97
    %p100 = scmp.ne.s32.totalorder %s85, %s99
    %p101 = scmp.eq.s32.totalorder %s19, 0
    %p102 = por %p100, %p101
    %s104 = sadd.s32 %s103, 1
    %p107 = scmp.eq.s32.totalorder %s13, 1
    %p108 = scmp.ne.s32.totalorder %s103, %s105
    %p109 = scmp.eq.s32.totalorder %s13, 0
    %p110 = por %p108, %p109
    %p111 = scmp.ne.s32.totalorder %s103, %s105
    %p112 = scmp.eq.s32.totalorder %s18, 1
    %p113 = por %p111, %p112
    %p114 = scmp.ne.s32.totalorder %s105, %s106
    %p115 = scmp.eq.s32.totalorder %s18, 0
    %p116 = por %p114, %p115
    %p117 = scmp.ne.s32.totalorder %s105, %s106
    %p118 = scmp.eq.s32.totalorder %s19, 1
    %p119 = por %p117, %p118
    %p121 = scmp.ne.s32.totalorder %s106, %s120
    %p122 = scmp.eq.s32.totalorder %s19, 0
    %p123 = por %p121, %p122
    %s125 = sadd.s32 %s124, 1
    %p128 = scmp.eq.s32.totalorder %s13, 1
    %p129 = scmp.ne.s32.totalorder %s124, %s126
    %p130 = scmp.eq.s32.totalorder %s13, 0
    %p131 = por %p129, %p130
    %p132 = scmp.ne.s32.totalorder %s124, %s126
    %p133 = scmp.eq.s32.totalorder %s18, 1
    %p134 = por %p132, %p133
    %p135 = scmp.ne.s32.totalorder %s126, %s127
    %p136 = scmp.eq.s32.totalorder %s18, 0
    %p137 = por %p135, %p136
    %p138 = scmp.ne.s32.totalorder %s126, %s127
    %p139 = scmp.eq.s32.totalorder %s19, 1
    %p140 = por %p138, %p139
    %p142 = scmp.ne.s32.totalorder %s127, %s141
    %p143 = scmp.eq.s32.totalorder %s19, 0
    %p144 = por %p142, %p143
    %s146 = sadd.s32 %s145, 1
    %p149 = scmp.eq.s32.totalorder %s13, 1
    %p150 = scmp.ne.s32.totalorder %s145, %s147
    %p151 = scmp.eq.s32.totalorder %s13, 0
    %p152 = por %p150, %p151
    %p153 = scmp.ne.s32.totalorder %s145, %s147
    %p154 = scmp.eq.s32.totalorder %s18, 1
    %p155 = por %p153, %p154
    %p156 = scmp.ne.s32.totalorder %s147, %s148
    %p157 = scmp.eq.s32.totalorder %s18, 0
    %p158 = por %p156, %p157
    %p159 = scmp.ne.s32.totalorder %s147, %s148
    %p160 = scmp.eq.s32.totalorder %s19, 1
    %p161 = por %p159, %p160
    %p163 = scmp.ne.s32.totalorder %s148, %s162
    %p164 = scmp.eq.s32.totalorder %s19, 0
    %p165 = por %p163, %p164
    %s167 = sadd.s32 %s166, 1
    %p170 = scmp.eq.s32.totalorder %s13, 1
    %p171 = scmp.ne.s32.totalorder %s166, %s168
    %p172 = scmp.eq.s32.totalorder %s13, 0
    %p173 = por %p171, %p172
    %p174 = scmp.ne.s32.totalorder %s166, %s168
    %p175 = scmp.eq.s32.totalorder %s18, 1
    %p176 = por %p174, %p175
    %p177 = scmp.ne.s32.totalorder %s168, %s169
    %p178 = scmp.eq.s32.totalorder %s18, 0
    %p179 = por %p177, %p178
    %p180 = scmp.ne.s32.totalorder %s168, %s169
    %p181 = scmp.eq.s32.totalorder %s19, 1
    %p182 = por %p180, %p181
    %p184 = scmp.ne.s32.totalorder %s169, %s183
    %p185 = scmp.eq.s32.totalorder %s19, 0
    %p186 = por %p184, %p185
    %s187 = ssub.s32 %s20, %s32
    %s188 = ssub.s32 %s21, %s28
    %s189 = sor.u32 %s187, %s188
    %p190 = scmp.eq.s32.totalorder %s189, 0
    %s192 = sadd.s32 %s191, 1
    %s193 = scalar_select %p190, %s191, %s192
    %p196 = pneg %p190
    %p197 = scmp.eq.s32.totalorder %s13, 1
    %p198 = por %p196, %p197
    %p199 = scmp.ne.s32.totalorder %s191, %s194
    %p200 = scmp.eq.s32.totalorder %s13, 0
    %p201 = por %p199, %p200
    %p202 = scmp.ne.s32.totalorder %s191, %s194
    %p203 = scmp.eq.s32.totalorder %s18, 1
    %p204 = por %p202, %p203
    %p205 = scmp.ne.s32.totalorder %s194, %s195
    %p206 = scmp.eq.s32.totalorder %s18, 0
    %p207 = por %p205, %p206
    %p208 = scmp.ne.s32.totalorder %s194, %s195
    %p209 = scmp.eq.s32.totalorder %s19, 1
    %p210 = por %p208, %p209
    %p212 = scmp.ne.s32.totalorder %s195, %s211
    %p213 = scmp.eq.s32.totalorder %s19, 0
    %p214 = por %p212, %p213
    %p215 = scmp.le.s32.totalorder 1, %s13
    %p216 = scmp.lt.s32.totalorder %s13, 3
    %p217 = pnand %p215, %p216
    %p218 = pneg %p217
    // Predicated region
    $region9: #{dwconv_pallas.1} parent=5 // pred_check
      _
    $region10: #{dwconv_pallas.1} parent=5 // pred_check_branch
      %220 = sbr.rel (%p217) target = $region12
    $region11: #{dwconv_pallas.1} parent=5 // pred_region
      %s221 = ssub.s32 %s13, 1
      // Predicated region
      $region13: #{dwconv_pallas.1} parent=11 // pred_check
        %p222 = pneg %p74
      $region14: #{dwconv_pallas.1} parent=11 // pred_check_branch
        %224 = sbr.rel (%p222) target = $region16
      $region15: #{dwconv_pallas.1} parent=11 // pred_region
        _
      $region16: #{dwconv_pallas.1} parent=11 // pred_fallthru
        _
      // Predicated region
      $region17: #{dwconv_pallas.1} parent=11 // pred_check
        %p225 = pneg %p95
      $region18: #{dwconv_pallas.1} parent=11 // pred_check_branch
        %227 = sbr.rel (%p225) target = $region20
      $region19: #{dwconv_pallas.1} parent=11 // pred_region
        _
      $region20: #{dwconv_pallas.1} parent=11 // pred_fallthru
        _
      // Predicated region
      $region21: #{dwconv_pallas.1} parent=11 // pred_check
        %p228 = pneg %p116
      $region22: #{dwconv_pallas.1} parent=11 // pred_check_branch
        %230 = sbr.rel (%p228) target = $region24
      $region23: #{dwconv_pallas.1} parent=11 // pred_region
        _
      $region24: #{dwconv_pallas.1} parent=11 // pred_fallthru
        _
      // Predicated region
      $region25: #{dwconv_pallas.1} parent=11 // pred_check
        %p231 = pneg %p137
      $region26: #{dwconv_pallas.1} parent=11 // pred_check_branch
        %233 = sbr.rel (%p231) target = $region28
      $region27: #{dwconv_pallas.1} parent=11 // pred_region
        _
      $region28: #{dwconv_pallas.1} parent=11 // pred_fallthru
        _
      // Predicated region
      $region29: #{dwconv_pallas.1} parent=11 // pred_check
        %p234 = pneg %p158
      $region30: #{dwconv_pallas.1} parent=11 // pred_check_branch
        %236 = sbr.rel (%p234) target = $region32
      $region31: #{dwconv_pallas.1} parent=11 // pred_region
        _
      $region32: #{dwconv_pallas.1} parent=11 // pred_fallthru
        _
      // Predicated region
      $region33: #{dwconv_pallas.1} parent=11 // pred_check
        %p237 = pneg %p179
      $region34: #{dwconv_pallas.1} parent=11 // pred_check_branch
        %239 = sbr.rel (%p237) target = $region36
      $region35: #{dwconv_pallas.1} parent=11 // pred_region
        _
      $region36: #{dwconv_pallas.1} parent=11 // pred_fallthru
        _
    $region12: #{dwconv_pallas.1} parent=5 // pred_fallthru
      _
    %p240 = scmp.lt.s32.totalorder %s13, 2
    // Predicated region
    $region37: #{dwconv_pallas.1} parent=5 // pred_check
      %p241 = pneg %p240
    $region38: #{dwconv_pallas.1} parent=5 // pred_check_branch
      %243 = sbr.rel (%p241) target = $region40
    $region39: #{dwconv_pallas.1} parent=5 // pred_region
      // Predicated region
      $region41: #{dwconv_pallas.1} parent=39 // pred_check
        %p244 = pneg %p47
      $region42: #{dwconv_pallas.1} parent=39 // pred_check_branch
        %246 = sbr.rel (%p244) target = $region44
      $region43: #{dwconv_pallas.1} parent=39 // pred_region
        %p247 = scmp.lt.s32.totalorder %s20, 1
        %s248 = scalar_select %p247, %s20, 1
        %p249 = scmp.lt.s32.totalorder %s21, 0
        %s250 = scalar_select %p249, %s21, 0
        %s251 = smul.addr %s250, 54
        %s252 = smul.addr %s248, 54
        %s253 = sadd.s32 %s251, %s252
        %s254 = smul.addr %s253, 4
        %s255 = scalar_lea.vmem %s0, %s254
      $region44: #{dwconv_pallas.1} parent=39 // pred_fallthru
        _
    $region40: #{dwconv_pallas.1} parent=5 // pred_fallthru
      _
    %p256 = scmp.le.s32.totalorder 1, %s13
    %p257 = scmp.lt.s32.totalorder %s13, 3
    %p258 = pnand %p256, %p257
    %p259 = pneg %p258
    // Predicated region
    $region45: #{dwconv_pallas.1} parent=5 // pred_check
      _
    $region46: #{dwconv_pallas.1} parent=5 // pred_check_branch
      %261 = sbr.rel (%p258) target = $region48
    $region47: #{dwconv_pallas.1} parent=5 // pred_region
      %s262 = ssub.s32 %s13, 1
      %p263 = scmp.lt.s32.totalorder %s22, 1
      %s264 = scalar_select %p263, %s22, 1
      %p265 = scmp.lt.s32.totalorder %s23, 0
      %s266 = scalar_select %p265, %s23, 0
      %s267 = smul.addr %s266, 54
      %s268 = smul.addr %s264, 54
      %s269 = sadd.s32 %s267, %s268
      %s270 = smul.addr %s269, 4
      %s271 = scalar_lea.vmem %s0, %s270
      %p272 = pneg %p53
      %p273 = pneg %p50
      %p274 = pneg %p74
      %p275 = pneg %p71
      %p276 = pneg %p95
      %p277 = pneg %p92
      %p278 = pneg %p116
      %p279 = pneg %p113
      %p280 = pneg %p137
      %p281 = pneg %p134
      %p282 = pneg %p158
      %p283 = pneg %p155
      %p284 = pneg %p179
      %p285 = pneg %p176
      %p286 = pneg %p207
      %p287 = pneg %p204
      %s288 = smul.u32 16, %s23
      %p289 = scmp.lt.s32.totalorder %s22, 1
      %s290 = scalar_select %p289, %s22, 1
      %p291 = scmp.lt.s32.totalorder %s288, 15
      %s292 = scalar_select %p291, %s288, 15
      %s293 = smul.addr %s292, 2
      %s294 = smul.addr %s290, 32
      %s295 = sadd.s32 %s293, %s294
      %s296 = smul.addr %s295, 8
      %s297 = scalar_lea.vmem %s7, %s296
      %p298 = scmp.lt.s32.totalorder %s22, 1
      %s299 = scalar_select %p298, %s22, 1
      %p300 = scmp.lt.s32.totalorder %s23, 0
      %s301 = scalar_select %p300, %s23, 0
      %s302 = smul.addr %s301, 54
      %s303 = smul.addr %s299, 54
      %s304 = sadd.s32 %s302, %s303
      %s305 = smul.addr %s304, 4
      %s306 = scalar_lea.vmem %s0, %s305
      %s307 = smul.u32 16, %s23
      %p308 = scmp.lt.s32.totalorder %s22, 1
      %s309 = scalar_select %p308, %s22, 1
      %p310 = scmp.lt.s32.totalorder %s307, 15
      %s311 = scalar_select %p310, %s307, 15
      %s312 = smul.addr %s311, 2
      %s313 = smul.addr %s309, 32
      %s314 = sadd.s32 %s312, %s313
      %s315 = smul.addr %s314, 8
      %s316 = scalar_lea.vmem %s7, %s315
      %s317 = smul.u32 16, %s23
      %v319 = vld [vmem:[%s306] sm:$0xf]
      %v320 = vld [vmem:[%s306 + $0x4] sm:$0xf]
      %v321 = vld [vmem:[%s306 + $0x8] sm:$0x1]
      %v322 = vld [vmem:[%s306 + $0xc] sm:$0xf]
      %v323 = vld [vmem:[%s306 + $0x10] sm:$0xf]
      %v324 = vld [vmem:[%s306 + $0x14] sm:$0x1]
      %v325 = vld [vmem:[%s306 + $0x18] sm:$0xf]
      %v326 = vld [vmem:[%s306 + $0x1c] sm:$0xf]
      %v327 = vld [vmem:[%s306 + $0x20] sm:$0x1]
      %v328 = vld [vmem:[%s306 + $0x24] sm:$0xf]
      %v329 = vld [vmem:[%s306 + $0x28] sm:$0xf]
      %v330 = vld [vmem:[%s306 + $0x2c] sm:$0x1]
      %v331 = vld [vmem:[%s306 + $0x30] sm:$0xf]
      %v332 = vld [vmem:[%s306 + $0x34] sm:$0xf]
      %v333 = vld [vmem:[%s306 + $0x38] sm:$0x1]
      %v334 = vld [vmem:[%s306 + $0x3c] sm:$0xf]
      %v335 = vld [vmem:[%s306 + $0x40] sm:$0xf]
      %v336 = vld [vmem:[%s306 + $0x44] sm:$0x1]
      %v337 = vld [vmem:[%s306 + $0x48] sm:$0xf]
      %v338 = vld [vmem:[%s306 + $0x4c] sm:$0xf]
      %v339 = vld [vmem:[%s306 + $0x50] sm:$0x1]
      %v340 = vld [vmem:[%s306 + $0x54] sm:$0xf]
      %v341 = vld [vmem:[%s306 + $0x58] sm:$0xf]
      %v342 = vld [vmem:[%s306 + $0x5c] sm:$0x1]
      %v343 = vld [vmem:[%s306 + $0x60] sm:$0xf]
      %v344 = vld [vmem:[%s306 + $0x64] sm:$0xf]
      %v345 = vld [vmem:[%s306 + $0x68] sm:$0x1]
      %v346 = vld [vmem:[%s306 + $0x6c] sm:$0xf]
      %v347 = vld [vmem:[%s306 + $0x70] sm:$0xf]
      %v348 = vld [vmem:[%s306 + $0x74] sm:$0x1]
      %v349 = vld [vmem:[%s306 + $0x78] sm:$0xf]
      %v350 = vld [vmem:[%s306 + $0x7c] sm:$0xf]
      %v351 = vld [vmem:[%s306 + $0x80] sm:$0x1]
      %v352 = vld [vmem:[%s306 + $0x84] sm:$0xf]
      %v353 = vld [vmem:[%s306 + $0x88] sm:$0xf]
      %v354 = vld [vmem:[%s306 + $0x8c] sm:$0x1]
      %v355 = vld [vmem:[%s306 + $0x90] sm:$0xf]
      %v356 = vld [vmem:[%s306 + $0x94] sm:$0xf]
      %v357 = vld [vmem:[%s306 + $0x98] sm:$0x1]
      %v358 = vld [vmem:[%s306 + $0x9c] sm:$0xf]
      %v359 = vld [vmem:[%s306 + $0xa0] sm:$0xf]
      %v360 = vld [vmem:[%s306 + $0xa4] sm:$0x1]
      %v361 = vld [vmem:[%s306 + $0xa8] sm:$0xf]
      %v362 = vld [vmem:[%s306 + $0xac] sm:$0xf]
      %v363 = vld [vmem:[%s306 + $0xb0] sm:$0x1]
      %v364 = vld [vmem:[%s306 + $0xb4] sm:$0xf]
      %v365 = vld [vmem:[%s306 + $0xb8] sm:$0xf]
      %v366 = vld [vmem:[%s306 + $0xbc] sm:$0x1]
      %v367 = vld [vmem:[%s306 + $0xc0] sm:$0xf]
      %v368 = vld [vmem:[%s306 + $0xc4] sm:$0xf]
      %v369 = vld [vmem:[%s306 + $0xc8] sm:$0x1]
      %v370 = vld [vmem:[%s306 + $0xcc] sm:$0xf]
      %v371 = vld [vmem:[%s306 + $0xd0] sm:$0xf]
      %v372 = vld [vmem:[%s306 + $0xd4] sm:$0x1]
      %v373 = vld [vmem:[%s1] sm:$0xff]
      %v374 = vld [vmem:[%s1 + $0x8] sm:$0x1]
      %v375 = vunpack.c.l.bf16 %v319
      %v376 = vunpack.c.l.bf16 %v320
      %v377 = vunpack.c.l.bf16 %v322
      %v378 = vunpack.c.l.bf16 %v323
      %v379 = vunpack.c.l.bf16 %v325
      %v380 = vunpack.c.l.bf16 %v326
      %v381 = vunpack.c.l.bf16 %v328
      %v382 = vunpack.c.l.bf16 %v329
      %v383 = vunpack.c.l.bf16 %v331
      %v384 = vunpack.c.l.bf16 %v332
      %v385 = vunpack.c.l.bf16 %v334
      %v386 = vunpack.c.l.bf16 %v335
      %v387 = vunpack.c.l.bf16 %v337
      %v388 = vunpack.c.l.bf16 %v338
      %v389 = vunpack.c.l.bf16 %v340
      %v390 = vunpack.c.l.bf16 %v341
      %v391 = vunpack.c.l.bf16 %v343
      %v392 = vunpack.c.l.bf16 %v344
      %v393 = vunpack.c.l.bf16 %v346
      %v394 = vunpack.c.l.bf16 %v347
      %v395 = vunpack.c.l.bf16 %v349
      %v396 = vunpack.c.l.bf16 %v350
      %v397 = vunpack.c.l.bf16 %v352
      %v398 = vunpack.c.l.bf16 %v353
      %v399 = vunpack.c.l.bf16 %v355
      %v400 = vunpack.c.l.bf16 %v356
      %v401 = vunpack.c.l.bf16 %v358
      %v402 = vunpack.c.l.bf16 %v359
      %v403 = vunpack.c.l.bf16 %v361
      %v404 = vunpack.c.l.bf16 %v362
      %v405 = vunpack.c.l.bf16 %v364
      %v406 = vunpack.c.l.bf16 %v365
      %v407 = vunpack.c.l.bf16 %v367
      %v408 = vunpack.c.l.bf16 %v368
      %v409 = vunpack.c.l.bf16 %v370
      %v410 = vunpack.c.l.bf16 %v371
      %v411 = vunpack.c.l.bf16 %v321
      %v412 = vunpack.c.l.bf16 %v324
      %v413 = vunpack.c.l.bf16 %v327
      %v414 = vunpack.c.l.bf16 %v330
      %v415 = vunpack.c.l.bf16 %v333
      %v416 = vunpack.c.l.bf16 %v336
      %v417 = vunpack.c.l.bf16 %v339
      %v418 = vunpack.c.l.bf16 %v342
      %v419 = vunpack.c.l.bf16 %v345
      %v420 = vunpack.c.l.bf16 %v348
      %v421 = vunpack.c.l.bf16 %v351
      %v422 = vunpack.c.l.bf16 %v354
      %v423 = vunpack.c.l.bf16 %v357
      %v424 = vunpack.c.l.bf16 %v360
      %v425 = vunpack.c.l.bf16 %v363
      %v426 = vunpack.c.l.bf16 %v366
      %v427 = vunpack.c.l.bf16 %v369
      %v428 = vunpack.c.l.bf16 %v372
      %v429 = vlaneseq
      %v430 = vshrl.u32 %v429, 7
      %v431 = vsub.s32 0, %v430
      %v432 = vrot.slane %v373, %v431
      %v433 = vmul.f32 %v375, %v432
      %v434 = vmul.f32 %v376, %v432
      %v435 = vmul.f32 %v377, %v432
      %v436 = vmul.f32 %v378, %v432
      %v437 = vmul.f32 %v379, %v432
      %v438 = vmul.f32 %v380, %v432
      %v439 = vmul.f32 %v381, %v432
      %v440 = vmul.f32 %v382, %v432
      %v441 = vmul.f32 %v383, %v432
      %v442 = vmul.f32 %v384, %v432
      %v443 = vmul.f32 %v385, %v432
      %v444 = vmul.f32 %v386, %v432
      %v445 = vmul.f32 %v387, %v432
      %v446 = vmul.f32 %v388, %v432
      %v447 = vmul.f32 %v389, %v432
      %v448 = vmul.f32 %v390, %v432
      %v449 = vmul.f32 %v391, %v432
      %v450 = vmul.f32 %v392, %v432
      %v451 = vmul.f32 %v393, %v432
      %v452 = vmul.f32 %v394, %v432
      %v453 = vmul.f32 %v395, %v432
      %v454 = vmul.f32 %v396, %v432
      %v455 = vmul.f32 %v397, %v432
      %v456 = vmul.f32 %v398, %v432
      %v457 = vmul.f32 %v399, %v432
      %v458 = vmul.f32 %v400, %v432
      %v459 = vmul.f32 %v401, %v432
      %v460 = vmul.f32 %v402, %v432
      %v461 = vmul.f32 %v403, %v432
      %v462 = vmul.f32 %v404, %v432
      %v463 = vmul.f32 %v405, %v432
      %v464 = vmul.f32 %v406, %v432
      %v465 = vadd.f32 %v433, 0.0
      %v466 = vadd.f32 %v434, 0.0
      %v467 = vadd.f32 %v435, 0.0
      %v468 = vadd.f32 %v436, 0.0
      %v469 = vadd.f32 %v437, 0.0
      %v470 = vadd.f32 %v438, 0.0
      %v471 = vadd.f32 %v439, 0.0
      %v472 = vadd.f32 %v440, 0.0
      %v473 = vadd.f32 %v441, 0.0
      %v474 = vadd.f32 %v442, 0.0
      %v475 = vadd.f32 %v443, 0.0
      %v476 = vadd.f32 %v444, 0.0
      %v477 = vadd.f32 %v445, 0.0
      %v478 = vadd.f32 %v446, 0.0
      %v479 = vadd.f32 %v447, 0.0
      %v480 = vadd.f32 %v448, 0.0
      %v481 = vadd.f32 %v449, 0.0
      %v482 = vadd.f32 %v450, 0.0
      %v483 = vadd.f32 %v451, 0.0
      %v484 = vadd.f32 %v452, 0.0
      %v485 = vadd.f32 %v453, 0.0
      %v486 = vadd.f32 %v454, 0.0
      %v487 = vadd.f32 %v455, 0.0
      %v488 = vadd.f32 %v456, 0.0
      %v489 = vadd.f32 %v457, 0.0
      %v490 = vadd.f32 %v458, 0.0
      %v491 = vadd.f32 %v459, 0.0
      %v492 = vadd.f32 %v460, 0.0
      %v493 = vadd.f32 %v461, 0.0
      %v494 = vadd.f32 %v462, 0.0
      %v495 = vadd.f32 %v463, 0.0
      %v496 = vadd.f32 %v464, 0.0
      %v497 = vlaneseq
      %v498 = vshrl.u32 %v497, 7
      %v499 = vsub.s32 1, %v498
      %v500 = vrot.slane %v373, %v499
      %v501 = vmul.f32 %v375, %v500
      %v502 = vmul.f32 %v376, %v500
      %v503 = vmul.f32 %v411, %v500
      %v504 = vmul.f32 %v377, %v500
      %v505 = vmul.f32 %v378, %v500
      %v506 = vmul.f32 %v412, %v500
      %v507 = vmul.f32 %v379, %v500
      %v508 = vmul.f32 %v380, %v500
      %v509 = vmul.f32 %v413, %v500
      %v510 = vmul.f32 %v381, %v500
      %v511 = vmul.f32 %v382, %v500
      %v512 = vmul.f32 %v414, %v500
      %v513 = vmul.f32 %v383, %v500
      %v514 = vmul.f32 %v384, %v500
      %v515 = vmul.f32 %v415, %v500
      %v516 = vmul.f32 %v385, %v500
      %v517 = vmul.f32 %v386, %v500
      %v518 = vmul.f32 %v416, %v500
      %v519 = vmul.f32 %v387, %v500
      %v520 = vmul.f32 %v388, %v500
      %v521 = vmul.f32 %v417, %v500
      %v522 = vmul.f32 %v389, %v500
      %v523 = vmul.f32 %v390, %v500
      %v524 = vmul.f32 %v418, %v500
      %v525 = vmul.f32 %v391, %v500
      %v526 = vmul.f32 %v392, %v500
      %v527 = vmul.f32 %v419, %v500
      %v528 = vmul.f32 %v393, %v500
      %v529 = vmul.f32 %v394, %v500
      %v530 = vmul.f32 %v420, %v500
      %v531 = vmul.f32 %v395, %v500
      %v532 = vmul.f32 %v396, %v500
      %v533 = vmul.f32 %v421, %v500
      %v534 = vmul.f32 %v397, %v500
      %v535 = vmul.f32 %v398, %v500
      %v536 = vmul.f32 %v422, %v500
      %v537 = vmul.f32 %v399, %v500
      %v538 = vmul.f32 %v400, %v500
      %v539 = vmul.f32 %v423, %v500
      %v540 = vmul.f32 %v401, %v500
      %v541 = vmul.f32 %v402, %v500
      %v542 = vmul.f32 %v424, %v500
      %v543 = vmul.f32 %v403, %v500
      %v544 = vmul.f32 %v404, %v500
      %v545 = vmul.f32 %v425, %v500
      %v546 = vmul.f32 %v405, %v500
      %v547 = vmul.f32 %v406, %v500
      %v548 = vmul.f32 %v426, %v500
      %vm597 = vcmask 1046528
      %v598 = vrot.slane %v501, 1
      %v599 = vrot.slane %v502, 1
      %v600 = vsel %vm597, %v598, %v599
      %v601 = vrot.slane %v503, 1
      %v602 = vsel %vm597, %v599, %v601
      %v603 = vrot.slane %v504, 1
      %v604 = vrot.slane %v505, 1
      %v605 = vsel %vm597, %v603, %v604
      %v606 = vrot.slane %v506, 1
      %v607 = vsel %vm597, %v604, %v606
      %v608 = vrot.slane %v507, 1
      %v609 = vrot.slane %v508, 1
      %v610 = vsel %vm597, %v608, %v609
      %v611 = vrot.slane %v509, 1
      %v612 = vsel %vm597, %v609, %v611
      %v613 = vrot.slane %v510, 1
      %v614 = vrot.slane %v511, 1
      %v615 = vsel %vm597, %v613, %v614
      %v616 = vrot.slane %v512, 1
      %v617 = vsel %vm597, %v614, %v616
      %v618 = vrot.slane %v513, 1
      %v619 = vrot.slane %v514, 1
      %v620 = vsel %vm597, %v618, %v619
      %v621 = vrot.slane %v515, 1
      %v622 = vsel %vm597, %v619, %v621
      %v623 = vrot.slane %v516, 1
      %v624 = vrot.slane %v517, 1
      %v625 = vsel %vm597, %v623, %v624
      %v626 = vrot.slane %v518, 1
      %v627 = vsel %vm597, %v624, %v626
      %v628 = vrot.slane %v519, 1
      %v629 = vrot.slane %v520, 1
      %v630 = vsel %vm597, %v628, %v629
      %v631 = vrot.slane %v521, 1
      %v632 = vsel %vm597, %v629, %v631
      %v633 = vrot.slane %v522, 1
      %v634 = vrot.slane %v523, 1
      %v635 = vsel %vm597, %v633, %v634
      %v636 = vrot.slane %v524, 1
      %v637 = vsel %vm597, %v634, %v636
      %v638 = vrot.slane %v525, 1
      %v639 = vrot.slane %v526, 1
      %v640 = vsel %vm597, %v638, %v639
      %v641 = vrot.slane %v527, 1
      %v642 = vsel %vm597, %v639, %v641
      %v643 = vrot.slane %v528, 1
      %v644 = vrot.slane %v529, 1
      %v645 = vsel %vm597, %v643, %v644
      %v646 = vrot.slane %v530, 1
      %v647 = vsel %vm597, %v644, %v646
      %v648 = vrot.slane %v531, 1
      %v649 = vrot.slane %v532, 1
      %v650 = vsel %vm597, %v648, %v649
      %v651 = vrot.slane %v533, 1
      %v652 = vsel %vm597, %v649, %v651
      %v653 = vrot.slane %v534, 1
      %v654 = vrot.slane %v535, 1
      %v655 = vsel %vm597, %v653, %v654
      %v656 = vrot.slane %v536, 1
      %v657 = vsel %vm597, %v654, %v656
      %v658 = vrot.slane %v537, 1
      %v659 = vrot.slane %v538, 1
      %v660 = vsel %vm597, %v658, %v659
      %v661 = vrot.slane %v539, 1
      %v662 = vsel %vm597, %v659, %v661
      %v663 = vrot.slane %v540, 1
      %v664 = vrot.slane %v541, 1
      %v665 = vsel %vm597, %v663, %v664
      %v666 = vrot.slane %v542, 1
      %v667 = vsel %vm597, %v664, %v666
      %v668 = vrot.slane %v543, 1
      %v669 = vrot.slane %v544, 1
      %v670 = vsel %vm597, %v668, %v669
      %v671 = vrot.slane %v545, 1
      %v672 = vsel %vm597, %v669, %v671
      %v673 = vrot.slane %v546, 1
      %v674 = vrot.slane %v547, 1
      %v675 = vsel %vm597, %v673, %v674
      %v676 = vrot.slane %v548, 1
      %v677 = vsel %vm597, %v674, %v676
      %v710 = vadd.f32 %v465, %v600
      %v711 = vadd.f32 %v466, %v602
      %v712 = vadd.f32 %v467, %v605
      %v713 = vadd.f32 %v468, %v607
      %v714 = vadd.f32 %v469, %v610
      %v715 = vadd.f32 %v470, %v612
      %v716 = vadd.f32 %v471, %v615
      %v717 = vadd.f32 %v472, %v617
      %v718 = vadd.f32 %v473, %v620
      %v719 = vadd.f32 %v474, %v622
      %v720 = vadd.f32 %v475, %v625
      %v721 = vadd.f32 %v476, %v627
      %v722 = vadd.f32 %v477, %v630
      %v723 = vadd.f32 %v478, %v632
      %v724 = vadd.f32 %v479, %v635
      %v725 = vadd.f32 %v480, %v637
      %v726 = vadd.f32 %v481, %v640
      %v727 = vadd.f32 %v482, %v642
      %v728 = vadd.f32 %v483, %v645
      %v729 = vadd.f32 %v484, %v647
      %v730 = vadd.f32 %v485, %v650
      %v731 = vadd.f32 %v486, %v652
      %v732 = vadd.f32 %v487, %v655
      %v733 = vadd.f32 %v488, %v657
      %v734 = vadd.f32 %v489, %v660
      %v735 = vadd.f32 %v490, %v662
      %v736 = vadd.f32 %v491, %v665
      %v737 = vadd.f32 %v492, %v667
      %v738 = vadd.f32 %v493, %v670
      %v739 = vadd.f32 %v494, %v672
      %v740 = vadd.f32 %v495, %v675
      %v741 = vadd.f32 %v496, %v677
      %v742 = vlaneseq
      %v743 = vshrl.u32 %v742, 7
      %v744 = vsub.s32 2, %v743
      %v745 = vrot.slane %v373, %v744
      %v746 = vmul.f32 %v375, %v745
      %v747 = vmul.f32 %v376, %v745
      %v748 = vmul.f32 %v411, %v745
      %v749 = vmul.f32 %v377, %v745
      %v750 = vmul.f32 %v378, %v745
      %v751 = vmul.f32 %v412, %v745
      %v752 = vmul.f32 %v379, %v745
      %v753 = vmul.f32 %v380, %v745
      %v754 = vmul.f32 %v413, %v745
      %v755 = vmul.f32 %v381, %v745
      %v756 = vmul.f32 %v382, %v745
      %v757 = vmul.f32 %v414, %v745
      %v758 = vmul.f32 %v383, %v745
      %v759 = vmul.f32 %v384, %v745
      %v760 = vmul.f32 %v415, %v745
      %v761 = vmul.f32 %v385, %v745
      %v762 = vmul.f32 %v386, %v745
      %v763 = vmul.f32 %v416, %v745
      %v764 = vmul.f32 %v387, %v745
      %v765 = vmul.f32 %v388, %v745
      %v766 = vmul.f32 %v417, %v745
      %v767 = vmul.f32 %v389, %v745
      %v768 = vmul.f32 %v390, %v745
      %v769 = vmul.f32 %v418, %v745
      %v770 = vmul.f32 %v391, %v745
      %v771 = vmul.f32 %v392, %v745
      %v772 = vmul.f32 %v419, %v745
      %v773 = vmul.f32 %v393, %v745
      %v774 = vmul.f32 %v394, %v745
      %v775 = vmul.f32 %v420, %v745
      %v776 = vmul.f32 %v395, %v745
      %v777 = vmul.f32 %v396, %v745
      %v778 = vmul.f32 %v421, %v745
      %v779 = vmul.f32 %v397, %v745
      %v780 = vmul.f32 %v398, %v745
      %v781 = vmul.f32 %v422, %v745
      %v782 = vmul.f32 %v399, %v745
      %v783 = vmul.f32 %v400, %v745
      %v784 = vmul.f32 %v423, %v745
      %v785 = vmul.f32 %v401, %v745
      %v786 = vmul.f32 %v402, %v745
      %v787 = vmul.f32 %v424, %v745
      %v788 = vmul.f32 %v403, %v745
      %v789 = vmul.f32 %v404, %v745
      %v790 = vmul.f32 %v425, %v745
      %v791 = vmul.f32 %v405, %v745
      %v792 = vmul.f32 %v406, %v745
      %v793 = vmul.f32 %v426, %v745
      %vm842 = vcmask 1045504
      %v843 = vrot.slane %v746, 2
      %v844 = vrot.slane %v747, 2
      %v845 = vsel %vm842, %v843, %v844
      %v846 = vrot.slane %v748, 2
      %v847 = vsel %vm842, %v844, %v846
      %v848 = vrot.slane %v749, 2
      %v849 = vrot.slane %v750, 2
      %v850 = vsel %vm842, %v848, %v849
      %v851 = vrot.slane %v751, 2
      %v852 = vsel %vm842, %v849, %v851
      %v853 = vrot.slane %v752, 2
      %v854 = vrot.slane %v753, 2
      %v855 = vsel %vm842, %v853, %v854
      %v856 = vrot.slane %v754, 2
      %v857 = vsel %vm842, %v854, %v856
      %v858 = vrot.slane %v755, 2
      %v859 = vrot.slane %v756, 2
      %v860 = vsel %vm842, %v858, %v859
      %v861 = vrot.slane %v757, 2
      %v862 = vsel %vm842, %v859, %v861
      %v863 = vrot.slane %v758, 2
      %v864 = vrot.slane %v759, 2
      %v865 = vsel %vm842, %v863, %v864
      %v866 = vrot.slane %v760, 2
      %v867 = vsel %vm842, %v864, %v866
      %v868 = vrot.slane %v761, 2
      %v869 = vrot.slane %v762, 2
      %v870 = vsel %vm842, %v868, %v869
      %v871 = vrot.slane %v763, 2
      %v872 = vsel %vm842, %v869, %v871
      %v873 = vrot.slane %v764, 2
      %v874 = vrot.slane %v765, 2
      %v875 = vsel %vm842, %v873, %v874
      %v876 = vrot.slane %v766, 2
      %v877 = vsel %vm842, %v874, %v876
      %v878 = vrot.slane %v767, 2
      %v879 = vrot.slane %v768, 2
      %v880 = vsel %vm842, %v878, %v879
      %v881 = vrot.slane %v769, 2
      %v882 = vsel %vm842, %v879, %v881
      %v883 = vrot.slane %v770, 2
      %v884 = vrot.slane %v771, 2
      %v885 = vsel %vm842, %v883, %v884
      %v886 = vrot.slane %v772, 2
      %v887 = vsel %vm842, %v884, %v886
      %v888 = vrot.slane %v773, 2
      %v889 = vrot.slane %v774, 2
      %v890 = vsel %vm842, %v888, %v889
      %v891 = vrot.slane %v775, 2
      %v892 = vsel %vm842, %v889, %v891
      %v893 = vrot.slane %v776, 2
      %v894 = vrot.slane %v777, 2
      %v895 = vsel %vm842, %v893, %v894
      %v896 = vrot.slane %v778, 2
      %v897 = vsel %vm842, %v894, %v896
      %v898 = vrot.slane %v779, 2
      %v899 = vrot.slane %v780, 2
      %v900 = vsel %vm842, %v898, %v899
      %v901 = vrot.slane %v781, 2
      %v902 = vsel %vm842, %v899, %v901
      %v903 = vrot.slane %v782, 2
      %v904 = vrot.slane %v783, 2
      %v905 = vsel %vm842, %v903, %v904
      %v906 = vrot.slane %v784, 2
      %v907 = vsel %vm842, %v904, %v906
      %v908 = vrot.slane %v785, 2
      %v909 = vrot.slane %v786, 2
      %v910 = vsel %vm842, %v908, %v909
      %v911 = vrot.slane %v787, 2
      %v912 = vsel %vm842, %v909, %v911
      %v913 = vrot.slane %v788, 2
      %v914 = vrot.slane %v789, 2
      %v915 = vsel %vm842, %v913, %v914
      %v916 = vrot.slane %v790, 2
      %v917 = vsel %vm842, %v914, %v916
      %v918 = vrot.slane %v791, 2
      %v919 = vrot.slane %v792, 2
      %v920 = vsel %vm842, %v918, %v919
      %v921 = vrot.slane %v793, 2
      %v922 = vsel %vm842, %v919, %v921
      %v955 = vadd.f32 %v710, %v845
      %v956 = vadd.f32 %v711, %v847
      %v957 = vadd.f32 %v712, %v850
      %v958 = vadd.f32 %v713, %v852
      %v959 = vadd.f32 %v714, %v855
      %v960 = vadd.f32 %v715, %v857
      %v961 = vadd.f32 %v716, %v860
      %v962 = vadd.f32 %v717, %v862
      %v963 = vadd.f32 %v718, %v865
      %v964 = vadd.f32 %v719, %v867
      %v965 = vadd.f32 %v720, %v870
      %v966 = vadd.f32 %v721, %v872
      %v967 = vadd.f32 %v722, %v875
      %v968 = vadd.f32 %v723, %v877
      %v969 = vadd.f32 %v724, %v880
      %v970 = vadd.f32 %v725, %v882
      %v971 = vadd.f32 %v726, %v885
      %v972 = vadd.f32 %v727, %v887
      %v973 = vadd.f32 %v728, %v890
      %v974 = vadd.f32 %v729, %v892
      %v975 = vadd.f32 %v730, %v895
      %v976 = vadd.f32 %v731, %v897
      %v977 = vadd.f32 %v732, %v900
      %v978 = vadd.f32 %v733, %v902
      %v979 = vadd.f32 %v734, %v905
      %v980 = vadd.f32 %v735, %v907
      %v981 = vadd.f32 %v736, %v910
      %v982 = vadd.f32 %v737, %v912
      %v983 = vadd.f32 %v738, %v915
      %v984 = vadd.f32 %v739, %v917
      %v985 = vadd.f32 %v740, %v920
      %v986 = vadd.f32 %v741, %v922
      %v987 = vlaneseq
      %v988 = vshrl.u32 %v987, 7
      %v989 = vsub.s32 3, %v988
      %v990 = vrot.slane %v373, %v989
      %v991 = vmul.f32 %v377, %v990
      %v992 = vmul.f32 %v378, %v990
      %v993 = vmul.f32 %v379, %v990
      %v994 = vmul.f32 %v380, %v990
      %v995 = vmul.f32 %v381, %v990
      %v996 = vmul.f32 %v382, %v990
      %v997 = vmul.f32 %v383, %v990
      %v998 = vmul.f32 %v384, %v990
      %v999 = vmul.f32 %v385, %v990
      %v1000 = vmul.f32 %v386, %v990
      %v1001 = vmul.f32 %v387, %v990
      %v1002 = vmul.f32 %v388, %v990
      %v1003 = vmul.f32 %v389, %v990
      %v1004 = vmul.f32 %v390, %v990
      %v1005 = vmul.f32 %v391, %v990
      %v1006 = vmul.f32 %v392, %v990
      %v1007 = vmul.f32 %v393, %v990
      %v1008 = vmul.f32 %v394, %v990
      %v1009 = vmul.f32 %v395, %v990
      %v1010 = vmul.f32 %v396, %v990
      %v1011 = vmul.f32 %v397, %v990
      %v1012 = vmul.f32 %v398, %v990
      %v1013 = vmul.f32 %v399, %v990
      %v1014 = vmul.f32 %v400, %v990
      %v1015 = vmul.f32 %v401, %v990
      %v1016 = vmul.f32 %v402, %v990
      %v1017 = vmul.f32 %v403, %v990
      %v1018 = vmul.f32 %v404, %v990
      %v1019 = vmul.f32 %v405, %v990
      %v1020 = vmul.f32 %v406, %v990
      %v1021 = vmul.f32 %v407, %v990
      %v1022 = vmul.f32 %v408, %v990
      %v1023 = vadd.f32 %v955, %v991
      %v1024 = vadd.f32 %v956, %v992
      %v1025 = vadd.f32 %v957, %v993
      %v1026 = vadd.f32 %v958, %v994
      %v1027 = vadd.f32 %v959, %v995
      %v1028 = vadd.f32 %v960, %v996
      %v1029 = vadd.f32 %v961, %v997
      %v1030 = vadd.f32 %v962, %v998
      %v1031 = vadd.f32 %v963, %v999
      %v1032 = vadd.f32 %v964, %v1000
      %v1033 = vadd.f32 %v965, %v1001
      %v1034 = vadd.f32 %v966, %v1002
      %v1035 = vadd.f32 %v967, %v1003
      %v1036 = vadd.f32 %v968, %v1004
      %v1037 = vadd.f32 %v969, %v1005
      %v1038 = vadd.f32 %v970, %v1006
      %v1039 = vadd.f32 %v971, %v1007
      %v1040 = vadd.f32 %v972, %v1008
      %v1041 = vadd.f32 %v973, %v1009
      %v1042 = vadd.f32 %v974, %v1010
      %v1043 = vadd.f32 %v975, %v1011
      %v1044 = vadd.f32 %v976, %v1012
      %v1045 = vadd.f32 %v977, %v1013
      %v1046 = vadd.f32 %v978, %v1014
      %v1047 = vadd.f32 %v979, %v1015
      %v1048 = vadd.f32 %v980, %v1016
      %v1049 = vadd.f32 %v981, %v1017
      %v1050 = vadd.f32 %v982, %v1018
      %v1051 = vadd.f32 %v983, %v1019
      %v1052 = vadd.f32 %v984, %v1020
      %v1053 = vadd.f32 %v985, %v1021
      %v1054 = vadd.f32 %v986, %v1022
      %v1055 = vlaneseq
      %v1056 = vshrl.u32 %v1055, 7
      %v1057 = vsub.s32 4, %v1056
      %v1058 = vrot.slane %v373, %v1057
      %v1059 = vmul.f32 %v377, %v1058
      %v1060 = vmul.f32 %v378, %v1058
      %v1061 = vmul.f32 %v412, %v1058
      %v1062 = vmul.f32 %v379, %v1058
      %v1063 = vmul.f32 %v380, %v1058
      %v1064 = vmul.f32 %v413, %v1058
      %v1065 = vmul.f32 %v381, %v1058
      %v1066 = vmul.f32 %v382, %v1058
      %v1067 = vmul.f32 %v414, %v1058
      %v1068 = vmul.f32 %v383, %v1058
      %v1069 = vmul.f32 %v384, %v1058
      %v1070 = vmul.f32 %v415, %v1058
      %v1071 = vmul.f32 %v385, %v1058
      %v1072 = vmul.f32 %v386, %v1058
      %v1073 = vmul.f32 %v416, %v1058
      %v1074 = vmul.f32 %v387, %v1058
      %v1075 = vmul.f32 %v388, %v1058
      %v1076 = vmul.f32 %v417, %v1058
      %v1077 = vmul.f32 %v389, %v1058
      %v1078 = vmul.f32 %v390, %v1058
      %v1079 = vmul.f32 %v418, %v1058
      %v1080 = vmul.f32 %v391, %v1058
      %v1081 = vmul.f32 %v392, %v1058
      %v1082 = vmul.f32 %v419, %v1058
      %v1083 = vmul.f32 %v393, %v1058
      %v1084 = vmul.f32 %v394, %v1058
      %v1085 = vmul.f32 %v420, %v1058
      %v1086 = vmul.f32 %v395, %v1058
      %v1087 = vmul.f32 %v396, %v1058
      %v1088 = vmul.f32 %v421, %v1058
      %v1089 = vmul.f32 %v397, %v1058
      %v1090 = vmul.f32 %v398, %v1058
      %v1091 = vmul.f32 %v422, %v1058
      %v1092 = vmul.f32 %v399, %v1058
      %v1093 = vmul.f32 %v400, %v1058
      %v1094 = vmul.f32 %v423, %v1058
      %v1095 = vmul.f32 %v401, %v1058
      %v1096 = vmul.f32 %v402, %v1058
      %v1097 = vmul.f32 %v424, %v1058
      %v1098 = vmul.f32 %v403, %v1058
      %v1099 = vmul.f32 %v404, %v1058
      %v1100 = vmul.f32 %v425, %v1058
      %v1101 = vmul.f32 %v405, %v1058
      %v1102 = vmul.f32 %v406, %v1058
      %v1103 = vmul.f32 %v426, %v1058
      %v1104 = vmul.f32 %v407, %v1058
      %v1105 = vmul.f32 %v408, %v1058
      %v1106 = vmul.f32 %v427, %v1058
      %v1155 = vrot.slane %v1059, 1
      %v1156 = vrot.slane %v1060, 1
      %v1157 = vsel %vm597, %v1155, %v1156
      %v1158 = vrot.slane %v1061, 1
      %v1159 = vsel %vm597, %v1156, %v1158
      %v1160 = vrot.slane %v1062, 1
      %v1161 = vrot.slane %v1063, 1
      %v1162 = vsel %vm597, %v1160, %v1161
      %v1163 = vrot.slane %v1064, 1
      %v1164 = vsel %vm597, %v1161, %v1163
      %v1165 = vrot.slane %v1065, 1
      %v1166 = vrot.slane %v1066, 1
      %v1167 = vsel %vm597, %v1165, %v1166
      %v1168 = vrot.slane %v1067, 1
      %v1169 = vsel %vm597, %v1166, %v1168
      %v1170 = vrot.slane %v1068, 1
      %v1171 = vrot.slane %v1069, 1
      %v1172 = vsel %vm597, %v1170, %v1171
      %v1173 = vrot.slane %v1070, 1
      %v1174 = vsel %vm597, %v1171, %v1173
      %v1175 = vrot.slane %v1071, 1
      %v1176 = vrot.slane %v1072, 1
      %v1177 = vsel %vm597, %v1175, %v1176
      %v1178 = vrot.slane %v1073, 1
      %v1179 = vsel %vm597, %v1176, %v1178
      %v1180 = vrot.slane %v1074, 1
      %v1181 = vrot.slane %v1075, 1
      %v1182 = vsel %vm597, %v1180, %v1181
      %v1183 = vrot.slane %v1076, 1
      %v1184 = vsel %vm597, %v1181, %v1183
      %v1185 = vrot.slane %v1077, 1
      %v1186 = vrot.slane %v1078, 1
      %v1187 = vsel %vm597, %v1185, %v1186
      %v1188 = vrot.slane %v1079, 1
      %v1189 = vsel %vm597, %v1186, %v1188
      %v1190 = vrot.slane %v1080, 1
      %v1191 = vrot.slane %v1081, 1
      %v1192 = vsel %vm597, %v1190, %v1191
      %v1193 = vrot.slane %v1082, 1
      %v1194 = vsel %vm597, %v1191, %v1193
      %v1195 = vrot.slane %v1083, 1
      %v1196 = vrot.slane %v1084, 1
      %v1197 = vsel %vm597, %v1195, %v1196
      %v1198 = vrot.slane %v1085, 1
      %v1199 = vsel %vm597, %v1196, %v1198
      %v1200 = vrot.slane %v1086, 1
      %v1201 = vrot.slane %v1087, 1
      %v1202 = vsel %vm597, %v1200, %v1201
      %v1203 = vrot.slane %v1088, 1
      %v1204 = vsel %vm597, %v1201, %v1203
      %v1205 = vrot.slane %v1089, 1
      %v1206 = vrot.slane %v1090, 1
      %v1207 = vsel %vm597, %v1205, %v1206
      %v1208 = vrot.slane %v1091, 1
      %v1209 = vsel %vm597, %v1206, %v1208
      %v1210 = vrot.slane %v1092, 1
      %v1211 = vrot.slane %v1093, 1
      %v1212 = vsel %vm597, %v1210, %v1211
      %v1213 = vrot.slane %v1094, 1
      %v1214 = vsel %vm597, %v1211, %v1213
      %v1215 = vrot.slane %v1095, 1
      %v1216 = vrot.slane %v1096, 1
      %v1217 = vsel %vm597, %v1215, %v1216
      %v1218 = vrot.slane %v1097, 1
      %v1219 = vsel %vm597, %v1216, %v1218
      %v1220 = vrot.slane %v1098, 1
      %v1221 = vrot.slane %v1099, 1
      %v1222 = vsel %vm597, %v1220, %v1221
      %v1223 = vrot.slane %v1100, 1
      %v1224 = vsel %vm597, %v1221, %v1223
      %v1225 = vrot.slane %v1101, 1
      %v1226 = vrot.slane %v1102, 1
      %v1227 = vsel %vm597, %v1225, %v1226
      %v1228 = vrot.slane %v1103, 1
      %v1229 = vsel %vm597, %v1226, %v1228
      %v1230 = vrot.slane %v1104, 1
      %v1231 = vrot.slane %v1105, 1
      %v1232 = vsel %vm597, %v1230, %v1231
      %v1233 = vrot.slane %v1106, 1
      %v1234 = vsel %vm597, %v1231, %v1233
      %v1267 = vadd.f32 %v1023, %v1157
      %v1268 = vadd.f32 %v1024, %v1159
      %v1269 = vadd.f32 %v1025, %v1162
      %v1270 = vadd.f32 %v1026, %v1164
      %v1271 = vadd.f32 %v1027, %v1167
      %v1272 = vadd.f32 %v1028, %v1169
      %v1273 = vadd.f32 %v1029, %v1172
      %v1274 = vadd.f32 %v1030, %v1174
      %v1275 = vadd.f32 %v1031, %v1177
      %v1276 = vadd.f32 %v1032, %v1179
      %v1277 = vadd.f32 %v1033, %v1182
      %v1278 = vadd.f32 %v1034, %v1184
      %v1279 = vadd.f32 %v1035, %v1187
      %v1280 = vadd.f32 %v1036, %v1189
      %v1281 = vadd.f32 %v1037, %v1192
      %v1282 = vadd.f32 %v1038, %v1194
      %v1283 = vadd.f32 %v1039, %v1197
      %v1284 = vadd.f32 %v1040, %v1199
      %v1285 = vadd.f32 %v1041, %v1202
      %v1286 = vadd.f32 %v1042, %v1204
      %v1287 = vadd.f32 %v1043, %v1207
      %v1288 = vadd.f32 %v1044, %v1209
      %v1289 = vadd.f32 %v1045, %v1212
      %v1290 = vadd.f32 %v1046, %v1214
      %v1291 = vadd.f32 %v1047, %v1217
      %v1292 = vadd.f32 %v1048, %v1219
      %v1293 = vadd.f32 %v1049, %v1222
      %v1294 = vadd.f32 %v1050, %v1224
      %v1295 = vadd.f32 %v1051, %v1227
      %v1296 = vadd.f32 %v1052, %v1229
      %v1297 = vadd.f32 %v1053, %v1232
      %v1298 = vadd.f32 %v1054, %v1234
      %v1299 = vlaneseq
      %v1300 = vshrl.u32 %v1299, 7
      %v1301 = vsub.s32 5, %v1300
      %v1302 = vrot.slane %v373, %v1301
      %v1303 = vmul.f32 %v377, %v1302
      %v1304 = vmul.f32 %v378, %v1302
      %v1305 = vmul.f32 %v412, %v1302
      %v1306 = vmul.f32 %v379, %v1302
      %v1307 = vmul.f32 %v380, %v1302
      %v1308 = vmul.f32 %v413, %v1302
      %v1309 = vmul.f32 %v381, %v1302
      %v1310 = vmul.f32 %v382, %v1302
      %v1311 = vmul.f32 %v414, %v1302
      %v1312 = vmul.f32 %v383, %v1302
      %v1313 = vmul.f32 %v384, %v1302
      %v1314 = vmul.f32 %v415, %v1302
      %v1315 = vmul.f32 %v385, %v1302
      %v1316 = vmul.f32 %v386, %v1302
      %v1317 = vmul.f32 %v416, %v1302
      %v1318 = vmul.f32 %v387, %v1302
      %v1319 = vmul.f32 %v388, %v1302
      %v1320 = vmul.f32 %v417, %v1302
      %v1321 = vmul.f32 %v389, %v1302
      %v1322 = vmul.f32 %v390, %v1302
      %v1323 = vmul.f32 %v418, %v1302
      %v1324 = vmul.f32 %v391, %v1302
      %v1325 = vmul.f32 %v392, %v1302
      %v1326 = vmul.f32 %v419, %v1302
      %v1327 = vmul.f32 %v393, %v1302
      %v1328 = vmul.f32 %v394, %v1302
      %v1329 = vmul.f32 %v420, %v1302
      %v1330 = vmul.f32 %v395, %v1302
      %v1331 = vmul.f32 %v396, %v1302
      %v1332 = vmul.f32 %v421, %v1302
      %v1333 = vmul.f32 %v397, %v1302
      %v1334 = vmul.f32 %v398, %v1302
      %v1335 = vmul.f32 %v422, %v1302
      %v1336 = vmul.f32 %v399, %v1302
      %v1337 = vmul.f32 %v400, %v1302
      %v1338 = vmul.f32 %v423, %v1302
      %v1339 = vmul.f32 %v401, %v1302
      %v1340 = vmul.f32 %v402, %v1302
      %v1341 = vmul.f32 %v424, %v1302
      %v1342 = vmul.f32 %v403, %v1302
      %v1343 = vmul.f32 %v404, %v1302
      %v1344 = vmul.f32 %v425, %v1302
      %v1345 = vmul.f32 %v405, %v1302
      %v1346 = vmul.f32 %v406, %v1302
      %v1347 = vmul.f32 %v426, %v1302
      %v1348 = vmul.f32 %v407, %v1302
      %v1349 = vmul.f32 %v408, %v1302
      %v1350 = vmul.f32 %v427, %v1302
      %v1399 = vrot.slane %v1303, 2
      %v1400 = vrot.slane %v1304, 2
      %v1401 = vsel %vm842, %v1399, %v1400
      %v1402 = vrot.slane %v1305, 2
      %v1403 = vsel %vm842, %v1400, %v1402
      %v1404 = vrot.slane %v1306, 2
      %v1405 = vrot.slane %v1307, 2
      %v1406 = vsel %vm842, %v1404, %v1405
      %v1407 = vrot.slane %v1308, 2
      %v1408 = vsel %vm842, %v1405, %v1407
      %v1409 = vrot.slane %v1309, 2
      %v1410 = vrot.slane %v1310, 2
      %v1411 = vsel %vm842, %v1409, %v1410
      %v1412 = vrot.slane %v1311, 2
      %v1413 = vsel %vm842, %v1410, %v1412
      %v1414 = vrot.slane %v1312, 2
      %v1415 = vrot.slane %v1313, 2
      %v1416 = vsel %vm842, %v1414, %v1415
      %v1417 = vrot.slane %v1314, 2
      %v1418 = vsel %vm842, %v1415, %v1417
      %v1419 = vrot.slane %v1315, 2
      %v1420 = vrot.slane %v1316, 2
      %v1421 = vsel %vm842, %v1419, %v1420
      %v1422 = vrot.slane %v1317, 2
      %v1423 = vsel %vm842, %v1420, %v1422
      %v1424 = vrot.slane %v1318, 2
      %v1425 = vrot.slane %v1319, 2
      %v1426 = vsel %vm842, %v1424, %v1425
      %v1427 = vrot.slane %v1320, 2
      %v1428 = vsel %vm842, %v1425, %v1427
      %v1429 = vrot.slane %v1321, 2
      %v1430 = vrot.slane %v1322, 2
      %v1431 = vsel %vm842, %v1429, %v1430
      %v1432 = vrot.slane %v1323, 2
      %v1433 = vsel %vm842, %v1430, %v1432
      %v1434 = vrot.slane %v1324, 2
      %v1435 = vrot.slane %v1325, 2
      %v1436 = vsel %vm842, %v1434, %v1435
      %v1437 = vrot.slane %v1326, 2
      %v1438 = vsel %vm842, %v1435, %v1437
      %v1439 = vrot.slane %v1327, 2
      %v1440 = vrot.slane %v1328, 2
      %v1441 = vsel %vm842, %v1439, %v1440
      %v1442 = vrot.slane %v1329, 2
      %v1443 = vsel %vm842, %v1440, %v1442
      %v1444 = vrot.slane %v1330, 2
      %v1445 = vrot.slane %v1331, 2
      %v1446 = vsel %vm842, %v1444, %v1445
      %v1447 = vrot.slane %v1332, 2
      %v1448 = vsel %vm842, %v1445, %v1447
      %v1449 = vrot.slane %v1333, 2
      %v1450 = vrot.slane %v1334, 2
      %v1451 = vsel %vm842, %v1449, %v1450
      %v1452 = vrot.slane %v1335, 2
      %v1453 = vsel %vm842, %v1450, %v1452
      %v1454 = vrot.slane %v1336, 2
      %v1455 = vrot.slane %v1337, 2
      %v1456 = vsel %vm842, %v1454, %v1455
      %v1457 = vrot.slane %v1338, 2
      %v1458 = vsel %vm842, %v1455, %v1457
      %v1459 = vrot.slane %v1339, 2
      %v1460 = vrot.slane %v1340, 2
      %v1461 = vsel %vm842, %v1459, %v1460
      %v1462 = vrot.slane %v1341, 2
      %v1463 = vsel %vm842, %v1460, %v1462
      %v1464 = vrot.slane %v1342, 2
      %v1465 = vrot.slane %v1343, 2
      %v1466 = vsel %vm842, %v1464, %v1465
      %v1467 = vrot.slane %v1344, 2
      %v1468 = vsel %vm842, %v1465, %v1467
      %v1469 = vrot.slane %v1345, 2
      %v1470 = vrot.slane %v1346, 2
      %v1471 = vsel %vm842, %v1469, %v1470
      %v1472 = vrot.slane %v1347, 2
      %v1473 = vsel %vm842, %v1470, %v1472
      %v1474 = vrot.slane %v1348, 2
      %v1475 = vrot.slane %v1349, 2
      %v1476 = vsel %vm842, %v1474, %v1475
      %v1477 = vrot.slane %v1350, 2
      %v1478 = vsel %vm842, %v1475, %v1477
      %v1511 = vadd.f32 %v1267, %v1401
      %v1512 = vadd.f32 %v1268, %v1403
      %v1513 = vadd.f32 %v1269, %v1406
      %v1514 = vadd.f32 %v1270, %v1408
      %v1515 = vadd.f32 %v1271, %v1411
      %v1516 = vadd.f32 %v1272, %v1413
      %v1517 = vadd.f32 %v1273, %v1416
      %v1518 = vadd.f32 %v1274, %v1418
      %v1519 = vadd.f32 %v1275, %v1421
      %v1520 = vadd.f32 %v1276, %v1423
      %v1521 = vadd.f32 %v1277, %v1426
      %v1522 = vadd.f32 %v1278, %v1428
      %v1523 = vadd.f32 %v1279, %v1431
      %v1524 = vadd.f32 %v1280, %v1433
      %v1525 = vadd.f32 %v1281, %v1436
      %v1526 = vadd.f32 %v1282, %v1438
      %v1527 = vadd.f32 %v1283, %v1441
      %v1528 = vadd.f32 %v1284, %v1443
      %v1529 = vadd.f32 %v1285, %v1446
      %v1530 = vadd.f32 %v1286, %v1448
      %v1531 = vadd.f32 %v1287, %v1451
      %v1532 = vadd.f32 %v1288, %v1453
      %v1533 = vadd.f32 %v1289, %v1456
      %v1534 = vadd.f32 %v1290, %v1458
      %v1535 = vadd.f32 %v1291, %v1461
      %v1536 = vadd.f32 %v1292, %v1463
      %v1537 = vadd.f32 %v1293, %v1466
      %v1538 = vadd.f32 %v1294, %v1468
      %v1539 = vadd.f32 %v1295, %v1471
      %v1540 = vadd.f32 %v1296, %v1473
      %v1541 = vadd.f32 %v1297, %v1476
      %v1542 = vadd.f32 %v1298, %v1478
      %v1543 = vlaneseq
      %v1544 = vshrl.u32 %v1543, 7
      %v1545 = vsub.s32 6, %v1544
      %v1546 = vrot.slane %v373, %v1545
      %v1547 = vmul.f32 %v379, %v1546
      %v1548 = vmul.f32 %v380, %v1546
      %v1549 = vmul.f32 %v381, %v1546
      %v1550 = vmul.f32 %v382, %v1546
      %v1551 = vmul.f32 %v383, %v1546
      %v1552 = vmul.f32 %v384, %v1546
      %v1553 = vmul.f32 %v385, %v1546
      %v1554 = vmul.f32 %v386, %v1546
      %v1555 = vmul.f32 %v387, %v1546
      %v1556 = vmul.f32 %v388, %v1546
      %v1557 = vmul.f32 %v389, %v1546
      %v1558 = vmul.f32 %v390, %v1546
      %v1559 = vmul.f32 %v391, %v1546
      %v1560 = vmul.f32 %v392, %v1546
      %v1561 = vmul.f32 %v393, %v1546
      %v1562 = vmul.f32 %v394, %v1546
      %v1563 = vmul.f32 %v395, %v1546
      %v1564 = vmul.f32 %v396, %v1546
      %v1565 = vmul.f32 %v397, %v1546
      %v1566 = vmul.f32 %v398, %v1546
      %v1567 = vmul.f32 %v399, %v1546
      %v1568 = vmul.f32 %v400, %v1546
      %v1569 = vmul.f32 %v401, %v1546
      %v1570 = vmul.f32 %v402, %v1546
      %v1571 = vmul.f32 %v403, %v1546
      %v1572 = vmul.f32 %v404, %v1546
      %v1573 = vmul.f32 %v405, %v1546
      %v1574 = vmul.f32 %v406, %v1546
      %v1575 = vmul.f32 %v407, %v1546
      %v1576 = vmul.f32 %v408, %v1546
      %v1577 = vmul.f32 %v409, %v1546
      %v1578 = vmul.f32 %v410, %v1546
      %v1579 = vadd.f32 %v1511, %v1547
      %v1580 = vadd.f32 %v1512, %v1548
      %v1581 = vadd.f32 %v1513, %v1549
      %v1582 = vadd.f32 %v1514, %v1550
      %v1583 = vadd.f32 %v1515, %v1551
      %v1584 = vadd.f32 %v1516, %v1552
      %v1585 = vadd.f32 %v1517, %v1553
      %v1586 = vadd.f32 %v1518, %v1554
      %v1587 = vadd.f32 %v1519, %v1555
      %v1588 = vadd.f32 %v1520, %v1556
      %v1589 = vadd.f32 %v1521, %v1557
      %v1590 = vadd.f32 %v1522, %v1558
      %v1591 = vadd.f32 %v1523, %v1559
      %v1592 = vadd.f32 %v1524, %v1560
      %v1593 = vadd.f32 %v1525, %v1561
      %v1594 = vadd.f32 %v1526, %v1562
      %v1595 = vadd.f32 %v1527, %v1563
      %v1596 = vadd.f32 %v1528, %v1564
      %v1597 = vadd.f32 %v1529, %v1565
      %v1598 = vadd.f32 %v1530, %v1566
      %v1599 = vadd.f32 %v1531, %v1567
      %v1600 = vadd.f32 %v1532, %v1568
      %v1601 = vadd.f32 %v1533, %v1569
      %v1602 = vadd.f32 %v1534, %v1570
      %v1603 = vadd.f32 %v1535, %v1571
      %v1604 = vadd.f32 %v1536, %v1572
      %v1605 = vadd.f32 %v1537, %v1573
      %v1606 = vadd.f32 %v1538, %v1574
      %v1607 = vadd.f32 %v1539, %v1575
      %v1608 = vadd.f32 %v1540, %v1576
      %v1609 = vadd.f32 %v1541, %v1577
      %v1610 = vadd.f32 %v1542, %v1578
      %v1611 = vlaneseq
      %v1612 = vshrl.u32 %v1611, 7
      %v1613 = vsub.s32 7, %v1612
      %v1614 = vrot.slane %v373, %v1613
      %v1615 = vmul.f32 %v379, %v1614
      %v1616 = vmul.f32 %v380, %v1614
      %v1617 = vmul.f32 %v413, %v1614
      %v1618 = vmul.f32 %v381, %v1614
      %v1619 = vmul.f32 %v382, %v1614
      %v1620 = vmul.f32 %v414, %v1614
      %v1621 = vmul.f32 %v383, %v1614
      %v1622 = vmul.f32 %v384, %v1614
      %v1623 = vmul.f32 %v415, %v1614
      %v1624 = vmul.f32 %v385, %v1614
      %v1625 = vmul.f32 %v386, %v1614
      %v1626 = vmul.f32 %v416, %v1614
      %v1627 = vmul.f32 %v387, %v1614
      %v1628 = vmul.f32 %v388, %v1614
      %v1629 = vmul.f32 %v417, %v1614
      %v1630 = vmul.f32 %v389, %v1614
      %v1631 = vmul.f32 %v390, %v1614
      %v1632 = vmul.f32 %v418, %v1614
      %v1633 = vmul.f32 %v391, %v1614
      %v1634 = vmul.f32 %v392, %v1614
      %v1635 = vmul.f32 %v419, %v1614
      %v1636 = vmul.f32 %v393, %v1614
      %v1637 = vmul.f32 %v394, %v1614
      %v1638 = vmul.f32 %v420, %v1614
      %v1639 = vmul.f32 %v395, %v1614
      %v1640 = vmul.f32 %v396, %v1614
      %v1641 = vmul.f32 %v421, %v1614
      %v1642 = vmul.f32 %v397, %v1614
      %v1643 = vmul.f32 %v398, %v1614
      %v1644 = vmul.f32 %v422, %v1614
      %v1645 = vmul.f32 %v399, %v1614
      %v1646 = vmul.f32 %v400, %v1614
      %v1647 = vmul.f32 %v423, %v1614
      %v1648 = vmul.f32 %v401, %v1614
      %v1649 = vmul.f32 %v402, %v1614
      %v1650 = vmul.f32 %v424, %v1614
      %v1651 = vmul.f32 %v403, %v1614
      %v1652 = vmul.f32 %v404, %v1614
      %v1653 = vmul.f32 %v425, %v1614
      %v1654 = vmul.f32 %v405, %v1614
      %v1655 = vmul.f32 %v406, %v1614
      %v1656 = vmul.f32 %v426, %v1614
      %v1657 = vmul.f32 %v407, %v1614
      %v1658 = vmul.f32 %v408, %v1614
      %v1659 = vmul.f32 %v427, %v1614
      %v1660 = vmul.f32 %v409, %v1614
      %v1661 = vmul.f32 %v410, %v1614
      %v1662 = vmul.f32 %v428, %v1614
      %v1711 = vrot.slane %v1615, 1
      %v1712 = vrot.slane %v1616, 1
      %v1713 = vsel %vm597, %v1711, %v1712
      %v1714 = vrot.slane %v1617, 1
      %v1715 = vsel %vm597, %v1712, %v1714
      %v1716 = vrot.slane %v1618, 1
      %v1717 = vrot.slane %v1619, 1
      %v1718 = vsel %vm597, %v1716, %v1717
      %v1719 = vrot.slane %v1620, 1
      %v1720 = vsel %vm597, %v1717, %v1719
      %v1721 = vrot.slane %v1621, 1
      %v1722 = vrot.slane %v1622, 1
      %v1723 = vsel %vm597, %v1721, %v1722
      %v1724 = vrot.slane %v1623, 1
      %v1725 = vsel %vm597, %v1722, %v1724
      %v1726 = vrot.slane %v1624, 1
      %v1727 = vrot.slane %v1625, 1
      %v1728 = vsel %vm597, %v1726, %v1727
      %v1729 = vrot.slane %v1626, 1
      %v1730 = vsel %vm597, %v1727, %v1729
      %v1731 = vrot.slane %v1627, 1
      %v1732 = vrot.slane %v1628, 1
      %v1733 = vsel %vm597, %v1731, %v1732
      %v1734 = vrot.slane %v1629, 1
      %v1735 = vsel %vm597, %v1732, %v1734
      %v1736 = vrot.slane %v1630, 1
      %v1737 = vrot.slane %v1631, 1
      %v1738 = vsel %vm597, %v1736, %v1737
      %v1739 = vrot.slane %v1632, 1
      %v1740 = vsel %vm597, %v1737, %v1739
      %v1741 = vrot.slane %v1633, 1
      %v1742 = vrot.slane %v1634, 1
      %v1743 = vsel %vm597, %v1741, %v1742
      %v1744 = vrot.slane %v1635, 1
      %v1745 = vsel %vm597, %v1742, %v1744
      %v1746 = vrot.slane %v1636, 1
      %v1747 = vrot.slane %v1637, 1
      %v1748 = vsel %vm597, %v1746, %v1747
      %v1749 = vrot.slane %v1638, 1
      %v1750 = vsel %vm597, %v1747, %v1749
      %v1751 = vrot.slane %v1639, 1
      %v1752 = vrot.slane %v1640, 1
      %v1753 = vsel %vm597, %v1751, %v1752
      %v1754 = vrot.slane %v1641, 1
      %v1755 = vsel %vm597, %v1752, %v1754
      %v1756 = vrot.slane %v1642, 1
      %v1757 = vrot.slane %v1643, 1
      %v1758 = vsel %vm597, %v1756, %v1757
      %v1759 = vrot.slane %v1644, 1
      %v1760 = vsel %vm597, %v1757, %v1759
      %v1761 = vrot.slane %v1645, 1
      %v1762 = vrot.slane %v1646, 1
      %v1763 = vsel %vm597, %v1761, %v1762
      %v1764 = vrot.slane %v1647, 1
      %v1765 = vsel %vm597, %v1762, %v1764
      %v1766 = vrot.slane %v1648, 1
      %v1767 = vrot.slane %v1649, 1
      %v1768 = vsel %vm597, %v1766, %v1767
      %v1769 = vrot.slane %v1650, 1
      %v1770 = vsel %vm597, %v1767, %v1769
      %v1771 = vrot.slane %v1651, 1
      %v1772 = vrot.slane %v1652, 1
      %v1773 = vsel %vm597, %v1771, %v1772
      %v1774 = vrot.slane %v1653, 1
      %v1775 = vsel %vm597, %v1772, %v1774
      %v1776 = vrot.slane %v1654, 1
      %v1777 = vrot.slane %v1655, 1
      %v1778 = vsel %vm597, %v1776, %v1777
      %v1779 = vrot.slane %v1656, 1
      %v1780 = vsel %vm597, %v1777, %v1779
      %v1781 = vrot.slane %v1657, 1
      %v1782 = vrot.slane %v1658, 1
      %v1783 = vsel %vm597, %v1781, %v1782
      %v1784 = vrot.slane %v1659, 1
      %v1785 = vsel %vm597, %v1782, %v1784
      %v1786 = vrot.slane %v1660, 1
      %v1787 = vrot.slane %v1661, 1
      %v1788 = vsel %vm597, %v1786, %v1787
      %v1789 = vrot.slane %v1662, 1
      %v1790 = vsel %vm597, %v1787, %v1789
      %v1823 = vadd.f32 %v1579, %v1713
      %v1824 = vadd.f32 %v1580, %v1715
      %v1825 = vadd.f32 %v1581, %v1718
      %v1826 = vadd.f32 %v1582, %v1720
      %v1827 = vadd.f32 %v1583, %v1723
      %v1828 = vadd.f32 %v1584, %v1725
      %v1829 = vadd.f32 %v1585, %v1728
      %v1830 = vadd.f32 %v1586, %v1730
      %v1831 = vadd.f32 %v1587, %v1733
      %v1832 = vadd.f32 %v1588, %v1735
      %v1833 = vadd.f32 %v1589, %v1738
      %v1834 = vadd.f32 %v1590, %v1740
      %v1835 = vadd.f32 %v1591, %v1743
      %v1836 = vadd.f32 %v1592, %v1745
      %v1837 = vadd.f32 %v1593, %v1748
      %v1838 = vadd.f32 %v1594, %v1750
      %v1839 = vadd.f32 %v1595, %v1753
      %v1840 = vadd.f32 %v1596, %v1755
      %v1841 = vadd.f32 %v1597, %v1758
      %v1842 = vadd.f32 %v1598, %v1760
      %v1843 = vadd.f32 %v1599, %v1763
      %v1844 = vadd.f32 %v1600, %v1765
      %v1845 = vadd.f32 %v1601, %v1768
      %v1846 = vadd.f32 %v1602, %v1770
      %v1847 = vadd.f32 %v1603, %v1773
      %v1848 = vadd.f32 %v1604, %v1775
      %v1849 = vadd.f32 %v1605, %v1778
      %v1850 = vadd.f32 %v1606, %v1780
      %v1851 = vadd.f32 %v1607, %v1783
      %v1852 = vadd.f32 %v1608, %v1785
      %v1853 = vadd.f32 %v1609, %v1788
      %v1854 = vadd.f32 %v1610, %v1790
      %v1855 = vlaneseq
      %v1856 = vshrl.u32 %v1855, 7
      %v1857 = vsub.s32 0, %v1856
      %v1858 = vrot.slane %v374, %v1857
      %v1859 = vmul.f32 %v379, %v1858
      %v1860 = vmul.f32 %v380, %v1858
      %v1861 = vmul.f32 %v413, %v1858
      %v1862 = vmul.f32 %v381, %v1858
      %v1863 = vmul.f32 %v382, %v1858
      %v1864 = vmul.f32 %v414, %v1858
      %v1865 = vmul.f32 %v383, %v1858
      %v1866 = vmul.f32 %v384, %v1858
      %v1867 = vmul.f32 %v415, %v1858
      %v1868 = vmul.f32 %v385, %v1858
      %v1869 = vmul.f32 %v386, %v1858
      %v1870 = vmul.f32 %v416, %v1858
      %v1871 = vmul.f32 %v387, %v1858
      %v1872 = vmul.f32 %v388, %v1858
      %v1873 = vmul.f32 %v417, %v1858
      %v1874 = vmul.f32 %v389, %v1858
      %v1875 = vmul.f32 %v390, %v1858
      %v1876 = vmul.f32 %v418, %v1858
      %v1877 = vmul.f32 %v391, %v1858
      %v1878 = vmul.f32 %v392, %v1858
      %v1879 = vmul.f32 %v419, %v1858
      %v1880 = vmul.f32 %v393, %v1858
      %v1881 = vmul.f32 %v394, %v1858
      %v1882 = vmul.f32 %v420, %v1858
      %v1883 = vmul.f32 %v395, %v1858
      %v1884 = vmul.f32 %v396, %v1858
      %v1885 = vmul.f32 %v421, %v1858
      %v1886 = vmul.f32 %v397, %v1858
      %v1887 = vmul.f32 %v398, %v1858
      %v1888 = vmul.f32 %v422, %v1858
      %v1889 = vmul.f32 %v399, %v1858
      %v1890 = vmul.f32 %v400, %v1858
      %v1891 = vmul.f32 %v423, %v1858
      %v1892 = vmul.f32 %v401, %v1858
      %v1893 = vmul.f32 %v402, %v1858
      %v1894 = vmul.f32 %v424, %v1858
      %v1895 = vmul.f32 %v403, %v1858
      %v1896 = vmul.f32 %v404, %v1858
      %v1897 = vmul.f32 %v425, %v1858
      %v1898 = vmul.f32 %v405, %v1858
      %v1899 = vmul.f32 %v406, %v1858
      %v1900 = vmul.f32 %v426, %v1858
      %v1901 = vmul.f32 %v407, %v1858
      %v1902 = vmul.f32 %v408, %v1858
      %v1903 = vmul.f32 %v427, %v1858
      %v1904 = vmul.f32 %v409, %v1858
      %v1905 = vmul.f32 %v410, %v1858
      %v1906 = vmul.f32 %v428, %v1858
      %v1955 = vrot.slane %v1859, 2
      %v1956 = vrot.slane %v1860, 2
      %v1957 = vsel %vm842, %v1955, %v1956
      %v1958 = vrot.slane %v1861, 2
      %v1959 = vsel %vm842, %v1956, %v1958
      %v1960 = vrot.slane %v1862, 2
      %v1961 = vrot.slane %v1863, 2
      %v1962 = vsel %vm842, %v1960, %v1961
      %v1963 = vrot.slane %v1864, 2
      %v1964 = vsel %vm842, %v1961, %v1963
      %v1965 = vrot.slane %v1865, 2
      %v1966 = vrot.slane %v1866, 2
      %v1967 = vsel %vm842, %v1965, %v1966
      %v1968 = vrot.slane %v1867, 2
      %v1969 = vsel %vm842, %v1966, %v1968
      %v1970 = vrot.slane %v1868, 2
      %v1971 = vrot.slane %v1869, 2
      %v1972 = vsel %vm842, %v1970, %v1971
      %v1973 = vrot.slane %v1870, 2
      %v1974 = vsel %vm842, %v1971, %v1973
      %v1975 = vrot.slane %v1871, 2
      %v1976 = vrot.slane %v1872, 2
      %v1977 = vsel %vm842, %v1975, %v1976
      %v1978 = vrot.slane %v1873, 2
      %v1979 = vsel %vm842, %v1976, %v1978
      %v1980 = vrot.slane %v1874, 2
      %v1981 = vrot.slane %v1875, 2
      %v1982 = vsel %vm842, %v1980, %v1981
      %v1983 = vrot.slane %v1876, 2
      %v1984 = vsel %vm842, %v1981, %v1983
      %v1985 = vrot.slane %v1877, 2
      %v1986 = vrot.slane %v1878, 2
      %v1987 = vsel %vm842, %v1985, %v1986
      %v1988 = vrot.slane %v1879, 2
      %v1989 = vsel %vm842, %v1986, %v1988
      %v1990 = vrot.slane %v1880, 2
      %v1991 = vrot.slane %v1881, 2
      %v1992 = vsel %vm842, %v1990, %v1991
      %v1993 = vrot.slane %v1882, 2
      %v1994 = vsel %vm842, %v1991, %v1993
      %v1995 = vrot.slane %v1883, 2
      %v1996 = vrot.slane %v1884, 2
      %v1997 = vsel %vm842, %v1995, %v1996
      %v1998 = vrot.slane %v1885, 2
      %v1999 = vsel %vm842, %v1996, %v1998
      %v2000 = vrot.slane %v1886, 2
      %v2001 = vrot.slane %v1887, 2
      %v2002 = vsel %vm842, %v2000, %v2001
      %v2003 = vrot.slane %v1888, 2
      %v2004 = vsel %vm842, %v2001, %v2003
      %v2005 = vrot.slane %v1889, 2
      %v2006 = vrot.slane %v1890, 2
      %v2007 = vsel %vm842, %v2005, %v2006
      %v2008 = vrot.slane %v1891, 2
      %v2009 = vsel %vm842, %v2006, %v2008
      %v2010 = vrot.slane %v1892, 2
      %v2011 = vrot.slane %v1893, 2
      %v2012 = vsel %vm842, %v2010, %v2011
      %v2013 = vrot.slane %v1894, 2
      %v2014 = vsel %vm842, %v2011, %v2013
      %v2015 = vrot.slane %v1895, 2
      %v2016 = vrot.slane %v1896, 2
      %v2017 = vsel %vm842, %v2015, %v2016
      %v2018 = vrot.slane %v1897, 2
      %v2019 = vsel %vm842, %v2016, %v2018
      %v2020 = vrot.slane %v1898, 2
      %v2021 = vrot.slane %v1899, 2
      %v2022 = vsel %vm842, %v2020, %v2021
      %v2023 = vrot.slane %v1900, 2
      %v2024 = vsel %vm842, %v2021, %v2023
      %v2025 = vrot.slane %v1901, 2
      %v2026 = vrot.slane %v1902, 2
      %v2027 = vsel %vm842, %v2025, %v2026
      %v2028 = vrot.slane %v1903, 2
      %v2029 = vsel %vm842, %v2026, %v2028
      %v2030 = vrot.slane %v1904, 2
      %v2031 = vrot.slane %v1905, 2
      %v2032 = vsel %vm842, %v2030, %v2031
      %v2033 = vrot.slane %v1906, 2
      %v2034 = vsel %vm842, %v2031, %v2033
      %v2067 = vadd.f32 %v1823, %v1957
      %v2068 = vadd.f32 %v1824, %v1959
      %v2069 = vadd.f32 %v1825, %v1962
      %v2070 = vadd.f32 %v1826, %v1964
      %v2071 = vadd.f32 %v1827, %v1967
      %v2072 = vadd.f32 %v1828, %v1969
      %v2073 = vadd.f32 %v1829, %v1972
      %v2074 = vadd.f32 %v1830, %v1974
      %v2075 = vadd.f32 %v1831, %v1977
      %v2076 = vadd.f32 %v1832, %v1979
      %v2077 = vadd.f32 %v1833, %v1982
      %v2078 = vadd.f32 %v1834, %v1984
      %v2079 = vadd.f32 %v1835, %v1987
      %v2080 = vadd.f32 %v1836, %v1989
      %v2081 = vadd.f32 %v1837, %v1992
      %v2082 = vadd.f32 %v1838, %v1994
      %v2083 = vadd.f32 %v1839, %v1997
      %v2084 = vadd.f32 %v1840, %v1999
      %v2085 = vadd.f32 %v1841, %v2002
      %v2086 = vadd.f32 %v1842, %v2004
      %v2087 = vadd.f32 %v1843, %v2007
      %v2088 = vadd.f32 %v1844, %v2009
      %v2089 = vadd.f32 %v1845, %v2012
      %v2090 = vadd.f32 %v1846, %v2014
      %v2091 = vadd.f32 %v1847, %v2017
      %v2092 = vadd.f32 %v1848, %v2019
      %v2093 = vadd.f32 %v1849, %v2022
      %v2094 = vadd.f32 %v1850, %v2024
      %v2095 = vadd.f32 %v1851, %v2027
      %v2096 = vadd.f32 %v1852, %v2029
      %v2097 = vadd.f32 %v1853, %v2032
      %v2098 = vadd.f32 %v1854, %v2034
      %v2099 = vld [vmem:[%s2] sm:$0x1]
      %v2101 = vlaneseq
      %v2102 = vshrl.u32 %v2101, 7
      %v2103 = vsub.s32 0, %v2102
      %v2104 = vrot.slane %v2099, %v2103
      %v2106 = vadd.f32 %v2067, %v2104
      %v2107 = vadd.f32 %v2068, %v2104
      %v2108 = vadd.f32 %v2069, %v2104
      %v2109 = vadd.f32 %v2070, %v2104
      %v2110 = vadd.f32 %v2071, %v2104
      %v2111 = vadd.f32 %v2072, %v2104
      %v2112 = vadd.f32 %v2073, %v2104
      %v2113 = vadd.f32 %v2074, %v2104
      %v2114 = vadd.f32 %v2075, %v2104
      %v2115 = vadd.f32 %v2076, %v2104
      %v2116 = vadd.f32 %v2077, %v2104
      %v2117 = vadd.f32 %v2078, %v2104
      %v2118 = vadd.f32 %v2079, %v2104
      %v2119 = vadd.f32 %v2080, %v2104
      %v2120 = vadd.f32 %v2081, %v2104
      %v2121 = vadd.f32 %v2082, %v2104
      %v2122 = vadd.f32 %v2083, %v2104
      %v2123 = vadd.f32 %v2084, %v2104
      %v2124 = vadd.f32 %v2085, %v2104
      %v2125 = vadd.f32 %v2086, %v2104
      %v2126 = vadd.f32 %v2087, %v2104
      %v2127 = vadd.f32 %v2088, %v2104
      %v2128 = vadd.f32 %v2089, %v2104
      %v2129 = vadd.f32 %v2090, %v2104
      %v2130 = vadd.f32 %v2091, %v2104
      %v2131 = vadd.f32 %v2092, %v2104
      %v2132 = vadd.f32 %v2093, %v2104
      %v2133 = vadd.f32 %v2094, %v2104
      %v2134 = vadd.f32 %v2095, %v2104
      %v2135 = vadd.f32 %v2096, %v2104
      %v2136 = vadd.f32 %v2097, %v2104
      %v2137 = vadd.f32 %v2098, %v2104
      %vm2138 = vcmp.gt.f32.partialorder %v2106, 0.0
      %vm2139 = vcmp.gt.f32.partialorder %v2107, 0.0
      %vm2140 = vcmp.gt.f32.partialorder %v2108, 0.0
      %vm2141 = vcmp.gt.f32.partialorder %v2109, 0.0
      %vm2142 = vcmp.gt.f32.partialorder %v2110, 0.0
      %vm2143 = vcmp.gt.f32.partialorder %v2111, 0.0
      %vm2144 = vcmp.gt.f32.partialorder %v2112, 0.0
      %vm2145 = vcmp.gt.f32.partialorder %v2113, 0.0
      %vm2146 = vcmp.gt.f32.partialorder %v2114, 0.0
      %vm2147 = vcmp.gt.f32.partialorder %v2115, 0.0
      %vm2148 = vcmp.gt.f32.partialorder %v2116, 0.0
      %vm2149 = vcmp.gt.f32.partialorder %v2117, 0.0
      %vm2150 = vcmp.gt.f32.partialorder %v2118, 0.0
      %vm2151 = vcmp.gt.f32.partialorder %v2119, 0.0
      %vm2152 = vcmp.gt.f32.partialorder %v2120, 0.0
      %vm2153 = vcmp.gt.f32.partialorder %v2121, 0.0
      %vm2154 = vcmp.gt.f32.partialorder %v2122, 0.0
      %vm2155 = vcmp.gt.f32.partialorder %v2123, 0.0
      %vm2156 = vcmp.gt.f32.partialorder %v2124, 0.0
      %vm2157 = vcmp.gt.f32.partialorder %v2125, 0.0
      %vm2158 = vcmp.gt.f32.partialorder %v2126, 0.0
      %vm2159 = vcmp.gt.f32.partialorder %v2127, 0.0
      %vm2160 = vcmp.gt.f32.partialorder %v2128, 0.0
      %vm2161 = vcmp.gt.f32.partialorder %v2129, 0.0
      %vm2162 = vcmp.gt.f32.partialorder %v2130, 0.0
      %vm2163 = vcmp.gt.f32.partialorder %v2131, 0.0
      %vm2164 = vcmp.gt.f32.partialorder %v2132, 0.0
      %vm2165 = vcmp.gt.f32.partialorder %v2133, 0.0
      %vm2166 = vcmp.gt.f32.partialorder %v2134, 0.0
      %vm2167 = vcmp.gt.f32.partialorder %v2135, 0.0
      %vm2168 = vcmp.gt.f32.partialorder %v2136, 0.0
      %vm2169 = vcmp.gt.f32.partialorder %v2137, 0.0
      %v2170 = vld [vmem:[%s3] sm:$0x1]
      %v2172 = vlaneseq
      %v2173 = vshrl.u32 %v2172, 7
      %v2174 = vsub.s32 0, %v2173
      %v2175 = vrot.slane %v2170, %v2174
      %v2177 = vmul.f32 %v2175, %v2106
      %v2178 = vmul.f32 %v2175, %v2107
      %v2179 = vmul.f32 %v2175, %v2108
      %v2180 = vmul.f32 %v2175, %v2109
      %v2181 = vmul.f32 %v2175, %v2110
      %v2182 = vmul.f32 %v2175, %v2111
      %v2183 = vmul.f32 %v2175, %v2112
      %v2184 = vmul.f32 %v2175, %v2113
      %v2185 = vmul.f32 %v2175, %v2114
      %v2186 = vmul.f32 %v2175, %v2115
      %v2187 = vmul.f32 %v2175, %v2116
      %v2188 = vmul.f32 %v2175, %v2117
      %v2189 = vmul.f32 %v2175, %v2118
      %v2190 = vmul.f32 %v2175, %v2119
      %v2191 = vmul.f32 %v2175, %v2120
      %v2192 = vmul.f32 %v2175, %v2121
      %v2193 = vmul.f32 %v2175, %v2122
      %v2194 = vmul.f32 %v2175, %v2123
      %v2195 = vmul.f32 %v2175, %v2124
      %v2196 = vmul.f32 %v2175, %v2125
      %v2197 = vmul.f32 %v2175, %v2126
      %v2198 = vmul.f32 %v2175, %v2127
      %v2199 = vmul.f32 %v2175, %v2128
      %v2200 = vmul.f32 %v2175, %v2129
      %v2201 = vmul.f32 %v2175, %v2130
      %v2202 = vmul.f32 %v2175, %v2131
      %v2203 = vmul.f32 %v2175, %v2132
      %v2204 = vmul.f32 %v2175, %v2133
      %v2205 = vmul.f32 %v2175, %v2134
      %v2206 = vmul.f32 %v2175, %v2135
      %v2207 = vmul.f32 %v2175, %v2136
      %v2208 = vmul.f32 %v2175, %v2137
      %v2209 = vsel %vm2138, %v2106, %v2177
      %v2210 = vsel %vm2139, %v2107, %v2178
      %v2211 = vsel %vm2140, %v2108, %v2179
      %v2212 = vsel %vm2141, %v2109, %v2180
      %v2213 = vsel %vm2142, %v2110, %v2181
      %v2214 = vsel %vm2143, %v2111, %v2182
      %v2215 = vsel %vm2144, %v2112, %v2183
      %v2216 = vsel %vm2145, %v2113, %v2184
      %v2217 = vsel %vm2146, %v2114, %v2185
      %v2218 = vsel %vm2147, %v2115, %v2186
      %v2219 = vsel %vm2148, %v2116, %v2187
      %v2220 = vsel %vm2149, %v2117, %v2188
      %v2221 = vsel %vm2150, %v2118, %v2189
      %v2222 = vsel %vm2151, %v2119, %v2190
      %v2223 = vsel %vm2152, %v2120, %v2191
      %v2224 = vsel %vm2153, %v2121, %v2192
      %v2225 = vsel %vm2154, %v2122, %v2193
      %v2226 = vsel %vm2155, %v2123, %v2194
      %v2227 = vsel %vm2156, %v2124, %v2195
      %v2228 = vsel %vm2157, %v2125, %v2196
      %v2229 = vsel %vm2158, %v2126, %v2197
      %v2230 = vsel %vm2159, %v2127, %v2198
      %v2231 = vsel %vm2160, %v2128, %v2199
      %v2232 = vsel %vm2161, %v2129, %v2200
      %v2233 = vsel %vm2162, %v2130, %v2201
      %v2234 = vsel %vm2163, %v2131, %v2202
      %v2235 = vsel %vm2164, %v2132, %v2203
      %v2236 = vsel %vm2165, %v2133, %v2204
      %v2237 = vsel %vm2166, %v2134, %v2205
      %v2238 = vsel %vm2167, %v2135, %v2206
      %v2239 = vsel %vm2168, %v2136, %v2207
      %v2240 = vsel %vm2169, %v2137, %v2208
      %v2241 = vpack.c.bf16 %v2210, %v2209
      %v2242 = vpack.c.bf16 %v2212, %v2211
      %v2243 = vpack.c.bf16 %v2214, %v2213
      %v2244 = vpack.c.bf16 %v2216, %v2215
      %v2245 = vpack.c.bf16 %v2218, %v2217
      %v2246 = vpack.c.bf16 %v2220, %v2219
      %v2247 = vpack.c.bf16 %v2222, %v2221
      %v2248 = vpack.c.bf16 %v2224, %v2223
      %v2249 = vpack.c.bf16 %v2226, %v2225
      %v2250 = vpack.c.bf16 %v2228, %v2227
      %v2251 = vpack.c.bf16 %v2230, %v2229
      %v2252 = vpack.c.bf16 %v2232, %v2231
      %v2253 = vpack.c.bf16 %v2234, %v2233
      %v2254 = vpack.c.bf16 %v2236, %v2235
      %v2255 = vpack.c.bf16 %v2238, %v2237
      %v2256 = vpack.c.bf16 %v2240, %v2239
      %v2257 = vld [vmem:[%s4] sm:$0xf]
      %v2258 = vld [vmem:[%s4 + $0x4] sm:$0xf]
      %v2259 = vld [vmem:[%s4 + $0x8] sm:$0xf]
      %v2260 = vld [vmem:[%s4 + $0xc] sm:$0xf]
      %v2261 = vld [vmem:[%s4 + $0x10] sm:$0xf]
      %v2262 = vld [vmem:[%s4 + $0x14] sm:$0xf]
      %v2263 = vld [vmem:[%s4 + $0x18] sm:$0xf]
      %v2264 = vld [vmem:[%s4 + $0x1c] sm:$0xf]
      %v2265 = vld [vmem:[%s4 + $0x20] sm:$0xf]
      %v2266 = vld [vmem:[%s4 + $0x24] sm:$0xf]
      %v2267 = vld [vmem:[%s4 + $0x28] sm:$0xf]
      %v2268 = vld [vmem:[%s4 + $0x2c] sm:$0xf]
      %v2269 = vld [vmem:[%s4 + $0x30] sm:$0xf]
      %v2270 = vld [vmem:[%s4 + $0x34] sm:$0xf]
      %v2271 = vld [vmem:[%s4 + $0x38] sm:$0xf]
      %v2272 = vld [vmem:[%s4 + $0x3c] sm:$0xf]
      %v2273 = vld [vmem:[%s5] sm:$0x1]
      %v2275 = vlaneseq
      %v2276 = vshrl.u32 %v2275, 7
      %v2277 = vsub.s32 0, %v2276
      %v2278 = vrot.slane %v2273, %v2277
      %v2296 = vunpack.c.l.b16 %v2257
      %v2297 = vunpack.c.l.b16 %v2258
      %v2298 = vunpack.c.l.b16 %v2259
      %v2299 = vunpack.c.l.b16 %v2260
      %v2300 = vunpack.c.l.b16 %v2261
      %v2301 = vunpack.c.l.b16 %v2262
      %v2302 = vunpack.c.l.b16 %v2263
      %v2303 = vunpack.c.l.b16 %v2264
      %v2304 = vunpack.c.l.b16 %v2265
      %v2305 = vunpack.c.l.b16 %v2266
      %v2306 = vunpack.c.l.b16 %v2267
      %v2307 = vunpack.c.l.b16 %v2268
      %v2308 = vunpack.c.l.b16 %v2269
      %v2309 = vunpack.c.l.b16 %v2270
      %v2310 = vunpack.c.l.b16 %v2271
      %v2311 = vunpack.c.l.b16 %v2272
      %v2312 = vpack.c.b16 %v2297, %v2296
      %v2313 = vpack.c.b16 %v2299, %v2298
      %v2314 = vpack.c.b16 %v2301, %v2300
      %v2315 = vpack.c.b16 %v2303, %v2302
      %v2316 = vpack.c.b16 %v2305, %v2304
      %v2317 = vpack.c.b16 %v2307, %v2306
      %v2318 = vpack.c.b16 %v2309, %v2308
      %v2319 = vpack.c.b16 %v2311, %v2310
      %2328 = vmatprep.subr.bf16.mxu0 0
      %2329 = vmatpush1.bf16.msra.mxu0 %v2319
      %2330 = vmatprep.subr.bf16.mxu0 0
      %2331 = vmatpush1.bf16.msra.mxu0 %v2318
      %2332 = vmatprep.subr.bf16.mxu0 0
      %2333 = vmatpush1.bf16.msra.mxu0 %v2317
      %2334 = vmatprep.subr.bf16.mxu0 0
      %2335 = vmatpush1.bf16.msra.mxu0 %v2316
      %2336 = vmatprep.subr.bf16.mxu0 0
      %2337 = vmatpush1.bf16.msra.mxu0 %v2315
      %2338 = vmatprep.subr.bf16.mxu0 0
      %2339 = vmatpush1.bf16.msra.mxu0 %v2314
      %2340 = vmatprep.subr.bf16.mxu0 0
      %2341 = vmatpush1.bf16.msra.mxu0 %v2313
      %2342 = vmatprep.subr.bf16.mxu0 0
      %2343 = vmatpush1.bf16.msra.mxu0 %v2312
      %2344 = vmatprep.subr.bf16.mxu0 0
      %2345 = vmatpush2.bf16.msra.mxu0 0
      %2346 = vmatprep.subr.bf16.mxu0 0
      %2347 = vmatpush2.bf16.msra.mxu0 0
      %2348 = vmatprep.subr.bf16.mxu0 0
      %2349 = vmatpush2.bf16.msra.mxu0 0
      %2350 = vmatprep.subr.bf16.mxu0 0
      %2351 = vmatpush2.bf16.msra.mxu0 0
      %2352 = vmatprep.subr.bf16.mxu0 0
      %2353 = vmatpush2.bf16.msra.mxu0 0
      %2354 = vmatprep.subr.bf16.mxu0 0
      %2355 = vmatpush2.bf16.msra.mxu0 0
      %2356 = vmatprep.subr.bf16.mxu0 0
      %2357 = vmatpush2.bf16.msra.mxu0 0
      %2358 = vmatprep.subr.bf16.mxu0 0
      %2359 = vmatpush2.bf16.msra.mxu0 0
      %2360 = vmatprep.mubr.bf16.mxu0 0
      %2361 = vmatmul.mubr.bf16.gmra.mxu0 %v2241
      %v2362 = vpop.f32.mrf.mxu0
      %v2363 = vadd.f32 %v2278, %v2362
      %v2364 = vpop.f32.mrf.mxu0
      %v2365 = vpop.f32.mrf.mxu0
      %v2366 = vadd.f32 %v2278, %v2365
      %v2367 = vpop.f32.mrf.mxu0
      %2368 = vmatprep.mubr.bf16.mxu0 0
      %2369 = vmatmul.mubr.bf16.gmra.mxu0 %v2242
      %v2370 = vpop.f32.mrf.mxu0
      %v2371 = vadd.f32 %v2278, %v2370
      %v2372 = vpop.f32.mrf.mxu0
      %v2373 = vpop.f32.mrf.mxu0
      %v2374 = vadd.f32 %v2278, %v2373
      %v2375 = vpop.f32.mrf.mxu0
      %2376 = vmatprep.mubr.bf16.mxu0 0
      %2377 = vmatmul.mubr.bf16.gmra.mxu0 %v2243
      %v2378 = vpop.f32.mrf.mxu0
      %v2379 = vadd.f32 %v2278, %v2378
      %v2380 = vpop.f32.mrf.mxu0
      %v2381 = vpop.f32.mrf.mxu0
      %v2382 = vadd.f32 %v2278, %v2381
      %v2383 = vpop.f32.mrf.mxu0
      %2384 = vmatprep.mubr.bf16.mxu0 0
      %2385 = vmatmul.mubr.bf16.gmra.mxu0 %v2244
      %v2386 = vpop.f32.mrf.mxu0
      %v2387 = vadd.f32 %v2278, %v2386
      %v2388 = vpop.f32.mrf.mxu0
      %v2389 = vpop.f32.mrf.mxu0
      %v2390 = vadd.f32 %v2278, %v2389
      %v2391 = vpop.f32.mrf.mxu0
      %2392 = vmatprep.mubr.bf16.mxu0 0
      %2393 = vmatmul.mubr.bf16.gmra.mxu0 %v2245
      %v2394 = vpop.f32.mrf.mxu0
      %v2395 = vadd.f32 %v2278, %v2394
      %v2396 = vpop.f32.mrf.mxu0
      %v2397 = vpop.f32.mrf.mxu0
      %v2398 = vadd.f32 %v2278, %v2397
      %v2399 = vpop.f32.mrf.mxu0
      %2400 = vmatprep.mubr.bf16.mxu0 0
      %2401 = vmatmul.mubr.bf16.gmra.mxu0 %v2246
      %v2402 = vpop.f32.mrf.mxu0
      %v2403 = vadd.f32 %v2278, %v2402
      %v2404 = vpop.f32.mrf.mxu0
      %v2405 = vpop.f32.mrf.mxu0
      %v2406 = vadd.f32 %v2278, %v2405
      %v2407 = vpop.f32.mrf.mxu0
      %2408 = vmatprep.mubr.bf16.mxu0 0
      %2409 = vmatmul.mubr.bf16.gmra.mxu0 %v2247
      %v2410 = vpop.f32.mrf.mxu0
      %v2411 = vadd.f32 %v2278, %v2410
      %v2412 = vpop.f32.mrf.mxu0
      %v2413 = vpop.f32.mrf.mxu0
      %v2414 = vadd.f32 %v2278, %v2413
      %v2415 = vpop.f32.mrf.mxu0
      %2416 = vmatprep.mubr.bf16.mxu0 0
      %2417 = vmatmul.mubr.bf16.gmra.mxu0 %v2248
      %v2418 = vpop.f32.mrf.mxu0
      %v2419 = vadd.f32 %v2278, %v2418
      %v2420 = vpop.f32.mrf.mxu0
      %v2421 = vpop.f32.mrf.mxu0
      %v2422 = vadd.f32 %v2278, %v2421
      %v2423 = vpop.f32.mrf.mxu0
      %2424 = vmatprep.mubr.bf16.mxu0 0
      %2425 = vmatmul.mubr.bf16.gmra.mxu0 %v2249
      %v2426 = vpop.f32.mrf.mxu0
      %v2427 = vadd.f32 %v2278, %v2426
      %v2428 = vpop.f32.mrf.mxu0
      %v2429 = vpop.f32.mrf.mxu0
      %v2430 = vadd.f32 %v2278, %v2429
      %v2431 = vpop.f32.mrf.mxu0
      %2432 = vmatprep.mubr.bf16.mxu0 0
      %2433 = vmatmul.mubr.bf16.gmra.mxu0 %v2250
      %v2434 = vpop.f32.mrf.mxu0
      %v2435 = vadd.f32 %v2278, %v2434
      %v2436 = vpop.f32.mrf.mxu0
      %v2437 = vpop.f32.mrf.mxu0
      %v2438 = vadd.f32 %v2278, %v2437
      %v2439 = vpop.f32.mrf.mxu0
      %2440 = vmatprep.mubr.bf16.mxu0 0
      %2441 = vmatmul.mubr.bf16.gmra.mxu0 %v2251
      %v2442 = vpop.f32.mrf.mxu0
      %v2443 = vadd.f32 %v2278, %v2442
      %v2444 = vpop.f32.mrf.mxu0
      %v2445 = vpop.f32.mrf.mxu0
      %v2446 = vadd.f32 %v2278, %v2445
      %v2447 = vpop.f32.mrf.mxu0
      %2448 = vmatprep.mubr.bf16.mxu0 0
      %2449 = vmatmul.mubr.bf16.gmra.mxu0 %v2252
      %v2450 = vpop.f32.mrf.mxu0
      %v2451 = vadd.f32 %v2278, %v2450
      %v2452 = vpop.f32.mrf.mxu0
      %v2453 = vpop.f32.mrf.mxu0
      %v2454 = vadd.f32 %v2278, %v2453
      %v2455 = vpop.f32.mrf.mxu0
      %2456 = vmatprep.mubr.bf16.mxu0 0
      %2457 = vmatmul.mubr.bf16.gmra.mxu0 %v2253
      %v2458 = vpop.f32.mrf.mxu0
      %v2459 = vadd.f32 %v2278, %v2458
      %v2460 = vpop.f32.mrf.mxu0
      %v2461 = vpop.f32.mrf.mxu0
      %v2462 = vadd.f32 %v2278, %v2461
      %v2463 = vpop.f32.mrf.mxu0
      %2464 = vmatprep.mubr.bf16.mxu0 0
      %2465 = vmatmul.mubr.bf16.gmra.mxu0 %v2254
      %v2466 = vpop.f32.mrf.mxu0
      %v2467 = vadd.f32 %v2278, %v2466
      %v2468 = vpop.f32.mrf.mxu0
      %v2469 = vpop.f32.mrf.mxu0
      %v2470 = vadd.f32 %v2278, %v2469
      %v2471 = vpop.f32.mrf.mxu0
      %2472 = vmatprep.mubr.bf16.mxu0 0
      %2473 = vmatmul.mubr.bf16.gmra.mxu0 %v2255
      %v2474 = vpop.f32.mrf.mxu0
      %v2475 = vadd.f32 %v2278, %v2474
      %v2476 = vpop.f32.mrf.mxu0
      %v2477 = vpop.f32.mrf.mxu0
      %v2478 = vadd.f32 %v2278, %v2477
      %v2479 = vpop.f32.mrf.mxu0
      %2480 = vmatprep.mubr.bf16.mxu0 0
      %2481 = vmatmul.mubr.bf16.gmra.mxu0 %v2256
      %v2482 = vpop.f32.mrf.mxu0
      %v2483 = vadd.f32 %v2278, %v2482
      %v2484 = vpop.f32.mrf.mxu0
      %v2485 = vpop.f32.mrf.mxu0
      %v2486 = vadd.f32 %v2278, %v2485
      %v2487 = vpop.f32.mrf.mxu0
      %2488 = vdwg.mxu0
      %vm2489 = vcmp.gt.f32.partialorder %v2363, 0.0
      %vm2490 = vcmp.gt.f32.partialorder %v2366, 0.0
      %vm2491 = vcmp.gt.f32.partialorder %v2371, 0.0
      %vm2492 = vcmp.gt.f32.partialorder %v2374, 0.0
      %vm2493 = vcmp.gt.f32.partialorder %v2379, 0.0
      %vm2494 = vcmp.gt.f32.partialorder %v2382, 0.0
      %vm2495 = vcmp.gt.f32.partialorder %v2387, 0.0
      %vm2496 = vcmp.gt.f32.partialorder %v2390, 0.0
      %vm2497 = vcmp.gt.f32.partialorder %v2395, 0.0
      %vm2498 = vcmp.gt.f32.partialorder %v2398, 0.0
      %vm2499 = vcmp.gt.f32.partialorder %v2403, 0.0
      %vm2500 = vcmp.gt.f32.partialorder %v2406, 0.0
      %vm2501 = vcmp.gt.f32.partialorder %v2411, 0.0
      %vm2502 = vcmp.gt.f32.partialorder %v2414, 0.0
      %vm2503 = vcmp.gt.f32.partialorder %v2419, 0.0
      %vm2504 = vcmp.gt.f32.partialorder %v2422, 0.0
      %vm2505 = vcmp.gt.f32.partialorder %v2427, 0.0
      %vm2506 = vcmp.gt.f32.partialorder %v2430, 0.0
      %vm2507 = vcmp.gt.f32.partialorder %v2435, 0.0
      %vm2508 = vcmp.gt.f32.partialorder %v2438, 0.0
      %vm2509 = vcmp.gt.f32.partialorder %v2443, 0.0
      %vm2510 = vcmp.gt.f32.partialorder %v2446, 0.0
      %vm2511 = vcmp.gt.f32.partialorder %v2451, 0.0
      %vm2512 = vcmp.gt.f32.partialorder %v2454, 0.0
      %vm2513 = vcmp.gt.f32.partialorder %v2459, 0.0
      %vm2514 = vcmp.gt.f32.partialorder %v2462, 0.0
      %vm2515 = vcmp.gt.f32.partialorder %v2467, 0.0
      %vm2516 = vcmp.gt.f32.partialorder %v2470, 0.0
      %vm2517 = vcmp.gt.f32.partialorder %v2475, 0.0
      %vm2518 = vcmp.gt.f32.partialorder %v2478, 0.0
      %vm2519 = vcmp.gt.f32.partialorder %v2483, 0.0
      %vm2520 = vcmp.gt.f32.partialorder %v2486, 0.0
      %v2521 = vld [vmem:[%s6] sm:$0x1]
      %v2523 = vlaneseq
      %v2524 = vshrl.u32 %v2523, 7
      %v2525 = vsub.s32 0, %v2524
      %v2526 = vrot.slane %v2521, %v2525
      %v2528 = vmul.f32 %v2526, %v2363
      %v2529 = vmul.f32 %v2526, %v2366
      %v2530 = vmul.f32 %v2526, %v2371
      %v2531 = vmul.f32 %v2526, %v2374
      %v2532 = vmul.f32 %v2526, %v2379
      %v2533 = vmul.f32 %v2526, %v2382
      %v2534 = vmul.f32 %v2526, %v2387
      %v2535 = vmul.f32 %v2526, %v2390
      %v2536 = vmul.f32 %v2526, %v2395
      %v2537 = vmul.f32 %v2526, %v2398
      %v2538 = vmul.f32 %v2526, %v2403
      %v2539 = vmul.f32 %v2526, %v2406
      %v2540 = vmul.f32 %v2526, %v2411
      %v2541 = vmul.f32 %v2526, %v2414
      %v2542 = vmul.f32 %v2526, %v2419
      %v2543 = vmul.f32 %v2526, %v2422
      %v2544 = vmul.f32 %v2526, %v2427
      %v2545 = vmul.f32 %v2526, %v2430
      %v2546 = vmul.f32 %v2526, %v2435
      %v2547 = vmul.f32 %v2526, %v2438
      %v2548 = vmul.f32 %v2526, %v2443
      %v2549 = vmul.f32 %v2526, %v2446
      %v2550 = vmul.f32 %v2526, %v2451
      %v2551 = vmul.f32 %v2526, %v2454
      %v2552 = vmul.f32 %v2526, %v2459
      %v2553 = vmul.f32 %v2526, %v2462
      %v2554 = vmul.f32 %v2526, %v2467
      %v2555 = vmul.f32 %v2526, %v2470
      %v2556 = vmul.f32 %v2526, %v2475
      %v2557 = vmul.f32 %v2526, %v2478
      %v2558 = vmul.f32 %v2526, %v2483
      %v2559 = vmul.f32 %v2526, %v2486
      %v2560 = vsel %vm2489, %v2363, %v2528
      %v2561 = vsel %vm2490, %v2366, %v2529
      %v2562 = vsel %vm2491, %v2371, %v2530
      %v2563 = vsel %vm2492, %v2374, %v2531
      %v2564 = vsel %vm2493, %v2379, %v2532
      %v2565 = vsel %vm2494, %v2382, %v2533
      %v2566 = vsel %vm2495, %v2387, %v2534
      %v2567 = vsel %vm2496, %v2390, %v2535
      %v2568 = vsel %vm2497, %v2395, %v2536
      %v2569 = vsel %vm2498, %v2398, %v2537
      %v2570 = vsel %vm2499, %v2403, %v2538
      %v2571 = vsel %vm2500, %v2406, %v2539
      %v2572 = vsel %vm2501, %v2411, %v2540
      %v2573 = vsel %vm2502, %v2414, %v2541
      %v2574 = vsel %vm2503, %v2419, %v2542
      %v2575 = vsel %vm2504, %v2422, %v2543
      %v2576 = vsel %vm2505, %v2427, %v2544
      %v2577 = vsel %vm2506, %v2430, %v2545
      %v2578 = vsel %vm2507, %v2435, %v2546
      %v2579 = vsel %vm2508, %v2438, %v2547
      %v2580 = vsel %vm2509, %v2443, %v2548
      %v2581 = vsel %vm2510, %v2446, %v2549
      %v2582 = vsel %vm2511, %v2451, %v2550
      %v2583 = vsel %vm2512, %v2454, %v2551
      %v2584 = vsel %vm2513, %v2459, %v2552
      %v2585 = vsel %vm2514, %v2462, %v2553
      %v2586 = vsel %vm2515, %v2467, %v2554
      %v2587 = vsel %vm2516, %v2470, %v2555
      %v2588 = vsel %vm2517, %v2475, %v2556
      %v2589 = vsel %vm2518, %v2478, %v2557
      %v2590 = vsel %vm2519, %v2483, %v2558
      %v2591 = vsel %vm2520, %v2486, %v2559
      %2592 = vst [vmem:[%s316] sm:$0xff] %v2560
      %2593 = vst [vmem:[%s316 + $0x8] sm:$0xff] %v2561
      %2594 = vst [vmem:[%s316 + $0x10] sm:$0xff] %v2562
      %2595 = vst [vmem:[%s316 + $0x18] sm:$0xff] %v2563
      %2596 = vst [vmem:[%s316 + $0x20] sm:$0xff] %v2564
      %2597 = vst [vmem:[%s316 + $0x28] sm:$0xff] %v2565
      %2598 = vst [vmem:[%s316 + $0x30] sm:$0xff] %v2566
      %2599 = vst [vmem:[%s316 + $0x38] sm:$0xff] %v2567
      %2600 = vst [vmem:[%s316 + $0x40] sm:$0xff] %v2568
      %2601 = vst [vmem:[%s316 + $0x48] sm:$0xff] %v2569
      %2602 = vst [vmem:[%s316 + $0x50] sm:$0xff] %v2570
      %2603 = vst [vmem:[%s316 + $0x58] sm:$0xff] %v2571
      %2604 = vst [vmem:[%s316 + $0x60] sm:$0xff] %v2572
      %2605 = vst [vmem:[%s316 + $0x68] sm:$0xff] %v2573
      %2606 = vst [vmem:[%s316 + $0x70] sm:$0xff] %v2574
      %2607 = vst [vmem:[%s316 + $0x78] sm:$0xff] %v2575
      %2608 = vst [vmem:[%s316 + $0x80] sm:$0xff] %v2576
      %2609 = vst [vmem:[%s316 + $0x88] sm:$0xff] %v2577
      %2610 = vst [vmem:[%s316 + $0x90] sm:$0xff] %v2578
      %2611 = vst [vmem:[%s316 + $0x98] sm:$0xff] %v2579
      %2612 = vst [vmem:[%s316 + $0xa0] sm:$0xff] %v2580
      %2613 = vst [vmem:[%s316 + $0xa8] sm:$0xff] %v2581
      %2614 = vst [vmem:[%s316 + $0xb0] sm:$0xff] %v2582
      %2615 = vst [vmem:[%s316 + $0xb8] sm:$0xff] %v2583
      %2616 = vst [vmem:[%s316 + $0xc0] sm:$0xff] %v2584
      %2617 = vst [vmem:[%s316 + $0xc8] sm:$0xff] %v2585
      %2618 = vst [vmem:[%s316 + $0xd0] sm:$0xff] %v2586
      %2619 = vst [vmem:[%s316 + $0xd8] sm:$0xff] %v2587
      %2620 = vst [vmem:[%s316 + $0xe0] sm:$0xff] %v2588
      %2621 = vst [vmem:[%s316 + $0xe8] sm:$0xff] %v2589
      %2622 = vst [vmem:[%s316 + $0xf0] sm:$0xff] %v2590
      %2623 = vst [vmem:[%s316 + $0xf8] sm:$0xff] %v2591
      %s2624 = smul.u32 16, %s23
      %p2625 = scmp.lt.s32.totalorder %s22, 1
      %s2626 = scalar_select %p2625, %s22, 1
      %p2627 = scmp.lt.s32.totalorder %s2624, 15
      %s2628 = scalar_select %p2627, %s2624, 15
      %s2629 = smul.addr %s2628, 2
      %s2630 = smul.addr %s2626, 32
      %s2631 = sadd.s32 %s2629, %s2630
      %s2632 = smul.addr %s2631, 8
      %s2633 = scalar_lea.vmem %s7, %s2632
      // Predicated region
      $region49: #{dwconv_pallas.1} parent=47 // pred_check
        %p2634 = pneg %p204
      $region50: #{dwconv_pallas.1} parent=47 // pred_check_branch
        %2636 = sbr.rel (%p2634) target = $region52
      $region51: #{dwconv_pallas.1} parent=47 // pred_region
        %s2637 = smul.u32 16, %s23
      $region52: #{dwconv_pallas.1} parent=47 // pred_fallthru
        _
    $region48: #{dwconv_pallas.1} parent=5 // pred_fallthru
      _
    %p2638 = scmp.le.s32.totalorder 2, %s13
    // Predicated region
    $region53: #{dwconv_pallas.1} parent=5 // pred_check
      %p2639 = pneg %p2638
    $region54: #{dwconv_pallas.1} parent=5 // pred_check_branch
      %2641 = sbr.rel (%p2639) target = $region56
    $region55: #{dwconv_pallas.1} parent=5 // pred_region
      %s2642 = ssub.s32 %s13, 2
      // Predicated region
      $region57: #{dwconv_pallas.1} parent=55 // pred_check
        %p2643 = pneg %p210
      $region58: #{dwconv_pallas.1} parent=55 // pred_check_branch
        %2645 = sbr.rel (%p2643) target = $region60
      $region59: #{dwconv_pallas.1} parent=55 // pred_region
        %s2646 = smul.u32 16, %s25
        %p2647 = scmp.lt.s32.totalorder %s24, 1
        %s2648 = scalar_select %p2647, %s24, 1
        %p2649 = scmp.lt.s32.totalorder %s2646, 15
        %s2650 = scalar_select %p2649, %s2646, 15
        %s2651 = smul.addr %s2650, 2
        %s2652 = smul.addr %s2648, 32
        %s2653 = sadd.s32 %s2651, %s2652
        %s2654 = smul.addr %s2653, 8
        %s2655 = scalar_lea.vmem %s7, %s2654
      $region60: #{dwconv_pallas.1} parent=55 // pred_fallthru
        _
    $region56: #{dwconv_pallas.1} parent=5 // pred_fallthru
      _
  $region6: #{dwconv_pallas.1} parent=0 // loop_footer
    %s17 = sadd.s32 1, %s13
  $region7: #{dwconv_pallas.1} parent=0 // loop_footer_branch
    %12 = sbr.rel target = $region3
  $region8: #{dwconv_pallas.1} parent=0 // loop_exit
    _

</llo_original>
